<compile_context>
chip_gen: v6e
topology: v6e:2x2x1
jax: 0.10.0
libtpu: 0.0.40
codegen_flags: <defaults>
</compile_context>

<pallas_src>
import functools

import jax
import jax.numpy as jnp
from jax.experimental import pallas as pl
from jax.experimental.pallas import tpu as pltpu

HIDDEN_DIM = 16
LATENT_DIM = 4


# -----------------------------------------------------------------------------
# Parameter packing: fuse per-gate weights, reorder gates to (i,f,o,g), compose
# the two FC layers, and consolidate everything into ONE bf16 VMEM operand.
# -----------------------------------------------------------------------------
def pack_params(params):
    (wih_e, whh_e, b_e, wfe, bfe, wfd, bfd, wih_d, whh_d, b_d) = params
    GATES = (0, 1, 3, 2)              # PyTorch order i,f,g,o  ->  i,f,o,g

    def fuse_w(w):                    # (4, in, out) -> (in, 4*out), i|f|o|g columns
        return jnp.concatenate([w[k] for k in GATES], axis=-1)

    def fuse_b(b):                    # (4, 1, out) -> (1, 4*out)
        return jnp.concatenate([b[k] for k in GATES], axis=-1)

    pieces = [
        ("wih_e", fuse_w(wih_e)),     # (Din, 4H)
        ("whh_e", fuse_w(whh_e)),     # (H,   4H)
        ("b_e",   fuse_b(b_e)),       # (1,   4H)
        ("w_fc",  wfe @ wfd),         # (H, H)   encoder_fc ∘ decoder_fc (no nonlinearity between)
        ("b_fc",  bfe @ wfd + bfd),   # (1, H)
        ("wih_d", fuse_w(wih_d)),     # (H,   4Din)
        ("whh_d", fuse_w(whh_d)),     # (Din, 4Din)
        ("b_d",   fuse_b(b_d)),       # (1,   4Din)
    ]
    ncols = max(p.shape[1] for _, p in pieces)
    ROWPAD = 16                       # bf16 sublane tile -> every slice stays tile-aligned
    layout, rows, row0 = {}, [], 0
    for name, p in pieces:
        r, c = p.shape
        layout[name] = (row0, r, c)
        rows.append(jnp.pad(p, ((0, (-r) % ROWPAD), (0, ncols - c))))
        row0 += rows[-1].shape[0]
    packed = jnp.concatenate(rows, axis=0).astype(jnp.bfloat16)   # (128, 64) bf16
    return packed, layout


# -----------------------------------------------------------------------------
# Kernel: whole forward pass, everything resident in VMEM, no grid.
# -----------------------------------------------------------------------------
def ae_kernel(x_ref, w_ref, out_ref, *, layout, dims):
    B, T, Din, H = dims
    f32, bf16 = jnp.float32, jnp.bfloat16

    def getw(name, dtype=None):
        r0, r, c = layout[name]
        w = w_ref[r0:r0 + r, 0:c]               # static, tile-aligned slice of the slab
        return w if dtype is None else w.astype(dtype)

    # Hoist all weight / bias loads out of the unrolled time loops.
    wih_e = getw("wih_e")                        # bf16 MXU operands
    whh_e = getw("whh_e")
    w_fc  = getw("w_fc")
    wih_d = getw("wih_d")
    whh_d = getw("whh_d")
    b_e   = getw("b_e", f32)                     # biases added in f32
    b_fc  = getw("b_fc", f32)
    b_d   = getw("b_d", f32)

    def lstm_step(pre, c, w):
        # Gate order along lanes is i | f | o | g: one fused sigmoid, one tanh.
        s = jax.nn.sigmoid(pre[:, :3 * w])
        g = jnp.tanh(pre[:, 3 * w:])
        i, f, o = s[:, :w], s[:, w:2 * w], s[:, 2 * w:]
        c_new = f * c + i * g
        return o * jnp.tanh(c_new), c_new

    # ---- encoder LSTM: input projection (+bias) hoisted out of the recurrence ----
    x2d = x_ref[...].reshape(B * T, Din)                           # layout-preserving
    xp = (jnp.dot(x2d.astype(bf16), wih_e, preferred_element_type=f32)
          + b_e).reshape(B, T, 4 * H)

    h = jnp.zeros((B, H), f32)
    c = jnp.zeros((B, H), f32)
    for t in range(T):                                             # small static unroll
        pre = xp[:, t, :] + jnp.dot(h.astype(bf16), whh_e,
                                    preferred_element_type=f32)
        h, c = lstm_step(pre, c, H)

    # ---- encoder_fc ∘ decoder_fc (pre-composed host-side) -> decoder input ----
    dec_in = jnp.dot(h.astype(bf16), w_fc, preferred_element_type=f32) + b_fc

    # ---- decoder LSTM: input projection is loop-invariant, compute once ----
    x_pre = jnp.dot(dec_in.astype(bf16), wih_d, preferred_element_type=f32) + b_d
    hd = jnp.zeros((B, Din), f32)
    cd = jnp.zeros((B, Din), f32)
    outs = []
    for t in range(T):
        pre = x_pre + jnp.dot(hd.astype(bf16), whh_d, preferred_element_type=f32)
        hd, cd = lstm_step(pre, cd, Din)
        outs.append(hd)

    # Lane-dense single store: (B, T*Din) instead of a masked (T,B,Din) block.
    out_ref[...] = jnp.concatenate(outs, axis=-1)


# -----------------------------------------------------------------------------
# Wrapper: batch-first in, batch-first out, no transposes.
# -----------------------------------------------------------------------------
def ae_forward(x, params, hidden_dim=HIDDEN_DIM):
    B, T, Din = x.shape
    packed, layout = pack_params(params)
    kernel = functools.partial(ae_kernel, layout=layout, dims=(B, T, Din, hidden_dim))
    vmem = pl.BlockSpec(memory_space=pltpu.MemorySpace.VMEM)
    out = pl.pallas_call(
        kernel,
        out_shape=jax.ShapeDtypeStruct((B, T * Din), jnp.float32),
        in_specs=[vmem, vmem],
        out_specs=vmem,
    )(x, packed)
    return out.reshape(B, T, Din)                # free metadata reshape


# ----------------------- pure-JAX reference (for checking) -----------------------
def ae_reference(x, params):
    (wih_e, whh_e, b_e, wfe, bfe, wfd, bfd, wih_d, whh_d, b_d) = params
    B, T, Din = x.shape
    H = whh_e.shape[1]

    def cell(xt, h, c, wih, whh, b):
        i = jax.nn.sigmoid(xt @ wih[0] + h @ whh[0] + b[0])
        f = jax.nn.sigmoid(xt @ wih[1] + h @ whh[1] + b[1])
        g = jnp.tanh(xt @ wih[2] + h @ whh[2] + b[2])
        o = jax.nn.sigmoid(xt @ wih[3] + h @ whh[3] + b[3])
        c = f * c + i * g
        h = o * jnp.tanh(c)
        return h, c

    h = jnp.zeros((B, H)); c = jnp.zeros((B, H))
    for t in range(T):
        h, c = cell(x[:, t, :], h, c, wih_e, whh_e, b_e)
    latent = h @ wfe + bfe
    dec_in = latent @ wfd + bfd
    hd = jnp.zeros((B, Din)); cd = jnp.zeros((B, Din))
    outs = []
    for t in range(T):
        hd, cd = cell(dec_in, hd, cd, wih_d, whh_d, b_d)
        outs.append(hd)
    return jnp.stack(outs, axis=1)


# ----------------------- deterministic parameter construction -----------------------
def make_params(key, input_dim, hidden_dim=HIDDEN_DIM, latent_dim=LATENT_DIM):
    ks = jax.random.split(key, 10)
    kH = 1.0 / jnp.sqrt(hidden_dim)
    kD = 1.0 / jnp.sqrt(input_dim)

    def u(k, shape, bound):
        return jax.random.uniform(k, shape, jnp.float32, -bound, bound)

    # encoder LSTM (input_dim -> hidden_dim), per-gate stacked (i, f, g, o)
    wih_e = u(ks[0], (4, input_dim, hidden_dim), kH)
    whh_e = u(ks[1], (4, hidden_dim, hidden_dim), kH)
    b_e   = u(ks[2], (4, 1, hidden_dim), kH) * 2.0     # b_ih + b_hh combined
    # encoder FC (hidden_dim -> latent_dim)
    wfe = u(ks[3], (hidden_dim, latent_dim), kH)
    bfe = u(ks[4], (1, latent_dim), kH)
    # decoder FC (latent_dim -> hidden_dim)
    wfd = u(ks[5], (latent_dim, hidden_dim), 1.0 / jnp.sqrt(latent_dim))
    bfd = u(ks[6], (1, hidden_dim), 1.0 / jnp.sqrt(latent_dim))
    # decoder LSTM (hidden_dim -> input_dim)
    wih_d = u(ks[7], (4, hidden_dim, input_dim), kD)
    whh_d = u(ks[8], (4, input_dim, input_dim), kD)
    b_d   = u(ks[9], (4, 1, input_dim), kD) * 2.0
    return (wih_e, whh_e, b_e, wfe, bfe, wfd, bfd, wih_d, whh_d, b_d)


if __name__ == "__main__":
    B, T, Din = 2, 8, 8          # batch=2, seq_len=8, input_shape=8
    key = jax.random.PRNGKey(0)
    kx, kp = jax.random.split(key)

    x = jax.random.normal(kx, (B, T, Din), jnp.float32)
    params = make_params(kp, Din)

    out = ae_forward(x, params)
    out = jax.block_until_ready(out)

    ref = ae_reference(x, params)
    assert out.shape == (B, T, Din), out.shape
    # Looser tolerance is the intentional bf16-MXU precision trade (f32 accumulate,
    # f32 gate/cell math); errors stay well inside this bound for these magnitudes.
    assert jnp.allclose(out, ref, atol=5e-2, rtol=5e-2), "mismatch vs reference"

    print("KERNEL_OK")
</pallas_src>

<mosaic_0001>
module attributes {stable_mosaic.version = 11 : i64} {
  func.func @ae_kernel(%arg0: memref<2x8x8xf32, #tpu.memory_space<vmem>>, %arg1: memref<128x64xbf16, #tpu.memory_space<vmem>>, %arg2: memref<2x64xf32, #tpu.memory_space<vmem>>) attributes {dimension_semantics = [], scalar_prefetch = 0 : i64, scratch_operands = 0 : i64, tpu.core_type = #tpu.core_type<tc>} {
    %c0 = arith.constant 0 : index
    %c0_0 = arith.constant 0 : index
    %0 = vector.load %arg1[%c0, %c0_0] : memref<128x64xbf16, #tpu.memory_space<vmem>>, vector<8x64xbf16>
    %c16 = arith.constant 16 : index
    %c0_1 = arith.constant 0 : index
    %1 = vector.load %arg1[%c16, %c0_1] : memref<128x64xbf16, #tpu.memory_space<vmem>>, vector<16x64xbf16>
    %c48 = arith.constant 48 : index
    %c0_2 = arith.constant 0 : index
    %2 = vector.load %arg1[%c48, %c0_2] : memref<128x64xbf16, #tpu.memory_space<vmem>>, vector<16x16xbf16>
    %c80 = arith.constant 80 : index
    %c0_3 = arith.constant 0 : index
    %3 = vector.load %arg1[%c80, %c0_3] : memref<128x64xbf16, #tpu.memory_space<vmem>>, vector<16x32xbf16>
    %c96 = arith.constant 96 : index
    %c0_4 = arith.constant 0 : index
    %4 = vector.load %arg1[%c96, %c0_4] : memref<128x64xbf16, #tpu.memory_space<vmem>>, vector<8x32xbf16>
    %c32 = arith.constant 32 : index
    %c0_5 = arith.constant 0 : index
    %5 = vector.load %arg1[%c32, %c0_5] : memref<128x64xbf16, #tpu.memory_space<vmem>>, vector<1x64xbf16>
    %6 = arith.extf %5 : vector<1x64xbf16> to vector<1x64xf32>
    %c64 = arith.constant 64 : index
    %c0_6 = arith.constant 0 : index
    %7 = vector.load %arg1[%c64, %c0_6] : memref<128x64xbf16, #tpu.memory_space<vmem>>, vector<1x16xbf16>
    %8 = arith.extf %7 : vector<1x16xbf16> to vector<1x16xf32>
    %c112 = arith.constant 112 : index
    %c0_7 = arith.constant 0 : index
    %9 = vector.load %arg1[%c112, %c0_7] : memref<128x64xbf16, #tpu.memory_space<vmem>>, vector<1x32xbf16>
    %10 = arith.extf %9 : vector<1x32xbf16> to vector<1x32xf32>
    %c0_8 = arith.constant 0 : index
    %c0_9 = arith.constant 0 : index
    %c0_10 = arith.constant 0 : index
    %11 = vector.load %arg0[%c0_8, %c0_9, %c0_10] : memref<2x8x8xf32, #tpu.memory_space<vmem>>, vector<2x8x8xf32>
    %12 = vector.shape_cast %11 : vector<2x8x8xf32> to vector<16x8xf32>
    %13 = arith.truncf %12 : vector<16x8xf32> to vector<16x8xbf16>
    %cst = arith.constant dense<0.000000e+00> : vector<16x64xf32>
    %14 = tpu.matmul %13, %0, %cst {dimension_numbers = #tpu.dot_dimension_numbers<[1], [0], [0], [1], [0, 0, 1, 1], [], []>} : vector<16x8xbf16>, vector<8x64xbf16>, vector<16x64xf32> -> vector<16x64xf32>
    %15 = vector.broadcast %6 : vector<1x64xf32> to vector<16x64xf32>
    %16 = arith.addf %14, %15 : vector<16x64xf32>
    %17 = vector.shape_cast %16 : vector<16x64xf32> to vector<2x8x64xf32>
    %cst_11 = arith.constant 0.000000e+00 : f32
    %18 = vector.broadcast %cst_11 : f32 to vector<2x16xf32>
    %cst_12 = arith.constant 0.000000e+00 : f32
    %19 = vector.broadcast %cst_12 : f32 to vector<2x16xf32>
    %20 = vector.extract_strided_slice %17 {offsets = [0, 0, 0], sizes = [2, 1, 64], strides = [1, 1, 1]} : vector<2x8x64xf32> to vector<2x1x64xf32>
    %21 = vector.shape_cast %20 : vector<2x1x64xf32> to vector<2x64xf32>
    %22 = arith.truncf %18 : vector<2x16xf32> to vector<2x16xbf16>
    %cst_13 = arith.constant dense<0.000000e+00> : vector<2x64xf32>
    %23 = tpu.matmul %22, %1, %cst_13 {dimension_numbers = #tpu.dot_dimension_numbers<[1], [0], [0], [1], [0, 0, 1, 1], [], []>} : vector<2x16xbf16>, vector<16x64xbf16>, vector<2x64xf32> -> vector<2x64xf32>
    %24 = arith.addf %21, %23 : vector<2x64xf32>
    %25 = vector.extract_strided_slice %24 {offsets = [0, 0], sizes = [2, 48], strides = [1, 1]} : vector<2x64xf32> to vector<2x48xf32>
    %26 = arith.negf %25 : vector<2x48xf32>
    %27 = math.exp %26 : vector<2x48xf32>
    %cst_14 = arith.constant 1.000000e+00 : f32
    %28 = vector.broadcast %cst_14 : f32 to vector<2x48xf32>
    %29 = arith.addf %28, %27 : vector<2x48xf32>
    %30 = arith.divf %28, %29 : vector<2x48xf32>
    %31 = vector.extract_strided_slice %24 {offsets = [0, 48], sizes = [2, 16], strides = [1, 1]} : vector<2x64xf32> to vector<2x16xf32>
    %32 = math.tanh %31 : vector<2x16xf32>
    %33 = vector.extract_strided_slice %30 {offsets = [0, 0], sizes = [2, 16], strides = [1, 1]} : vector<2x48xf32> to vector<2x16xf32>
    %34 = vector.extract_strided_slice %30 {offsets = [0, 16], sizes = [2, 16], strides = [1, 1]} : vector<2x48xf32> to vector<2x16xf32>
    %35 = vector.extract_strided_slice %30 {offsets = [0, 32], sizes = [2, 16], strides = [1, 1]} : vector<2x48xf32> to vector<2x16xf32>
    %36 = arith.mulf %34, %19 : vector<2x16xf32>
    %37 = arith.mulf %33, %32 : vector<2x16xf32>
    %38 = arith.addf %36, %37 : vector<2x16xf32>
    %39 = math.tanh %38 : vector<2x16xf32>
    %40 = arith.mulf %35, %39 : vector<2x16xf32>
    %41 = vector.extract_strided_slice %17 {offsets = [0, 1, 0], sizes = [2, 1, 64], strides = [1, 1, 1]} : vector<2x8x64xf32> to vector<2x1x64xf32>
    %42 = vector.shape_cast %41 : vector<2x1x64xf32> to vector<2x64xf32>
    %43 = arith.truncf %40 : vector<2x16xf32> to vector<2x16xbf16>
    %cst_15 = arith.constant dense<0.000000e+00> : vector<2x64xf32>
    %44 = tpu.matmul %43, %1, %cst_15 {dimension_numbers = #tpu.dot_dimension_numbers<[1], [0], [0], [1], [0, 0, 1, 1], [], []>} : vector<2x16xbf16>, vector<16x64xbf16>, vector<2x64xf32> -> vector<2x64xf32>
    %45 = arith.addf %42, %44 : vector<2x64xf32>
    %46 = vector.extract_strided_slice %45 {offsets = [0, 0], sizes = [2, 48], strides = [1, 1]} : vector<2x64xf32> to vector<2x48xf32>
    %47 = arith.negf %46 : vector<2x48xf32>
    %48 = math.exp %47 : vector<2x48xf32>
    %cst_16 = arith.constant 1.000000e+00 : f32
    %49 = vector.broadcast %cst_16 : f32 to vector<2x48xf32>
    %50 = arith.addf %49, %48 : vector<2x48xf32>
    %51 = arith.divf %49, %50 : vector<2x48xf32>
    %52 = vector.extract_strided_slice %45 {offsets = [0, 48], sizes = [2, 16], strides = [1, 1]} : vector<2x64xf32> to vector<2x16xf32>
    %53 = math.tanh %52 : vector<2x16xf32>
    %54 = vector.extract_strided_slice %51 {offsets = [0, 0], sizes = [2, 16], strides = [1, 1]} : vector<2x48xf32> to vector<2x16xf32>
    %55 = vector.extract_strided_slice %51 {offsets = [0, 16], sizes = [2, 16], strides = [1, 1]} : vector<2x48xf32> to vector<2x16xf32>
    %56 = vector.extract_strided_slice %51 {offsets = [0, 32], sizes = [2, 16], strides = [1, 1]} : vector<2x48xf32> to vector<2x16xf32>
    %57 = arith.mulf %55, %38 : vector<2x16xf32>
    %58 = arith.mulf %54, %53 : vector<2x16xf32>
    %59 = arith.addf %57, %58 : vector<2x16xf32>
    %60 = math.tanh %59 : vector<2x16xf32>
    %61 = arith.mulf %56, %60 : vector<2x16xf32>
    %62 = vector.extract_strided_slice %17 {offsets = [0, 2, 0], sizes = [2, 1, 64], strides = [1, 1, 1]} : vector<2x8x64xf32> to vector<2x1x64xf32>
    %63 = vector.shape_cast %62 : vector<2x1x64xf32> to vector<2x64xf32>
    %64 = arith.truncf %61 : vector<2x16xf32> to vector<2x16xbf16>
    %cst_17 = arith.constant dense<0.000000e+00> : vector<2x64xf32>
    %65 = tpu.matmul %64, %1, %cst_17 {dimension_numbers = #tpu.dot_dimension_numbers<[1], [0], [0], [1], [0, 0, 1, 1], [], []>} : vector<2x16xbf16>, vector<16x64xbf16>, vector<2x64xf32> -> vector<2x64xf32>
    %66 = arith.addf %63, %65 : vector<2x64xf32>
    %67 = vector.extract_strided_slice %66 {offsets = [0, 0], sizes = [2, 48], strides = [1, 1]} : vector<2x64xf32> to vector<2x48xf32>
    %68 = arith.negf %67 : vector<2x48xf32>
    %69 = math.exp %68 : vector<2x48xf32>
    %cst_18 = arith.constant 1.000000e+00 : f32
    %70 = vector.broadcast %cst_18 : f32 to vector<2x48xf32>
    %71 = arith.addf %70, %69 : vector<2x48xf32>
    %72 = arith.divf %70, %71 : vector<2x48xf32>
    %73 = vector.extract_strided_slice %66 {offsets = [0, 48], sizes = [2, 16], strides = [1, 1]} : vector<2x64xf32> to vector<2x16xf32>
    %74 = math.tanh %73 : vector<2x16xf32>
    %75 = vector.extract_strided_slice %72 {offsets = [0, 0], sizes = [2, 16], strides = [1, 1]} : vector<2x48xf32> to vector<2x16xf32>
    %76 = vector.extract_strided_slice %72 {offsets = [0, 16], sizes = [2, 16], strides = [1, 1]} : vector<2x48xf32> to vector<2x16xf32>
    %77 = vector.extract_strided_slice %72 {offsets = [0, 32], sizes = [2, 16], strides = [1, 1]} : vector<2x48xf32> to vector<2x16xf32>
    %78 = arith.mulf %76, %59 : vector<2x16xf32>
    %79 = arith.mulf %75, %74 : vector<2x16xf32>
    %80 = arith.addf %78, %79 : vector<2x16xf32>
    %81 = math.tanh %80 : vector<2x16xf32>
    %82 = arith.mulf %77, %81 : vector<2x16xf32>
    %83 = vector.extract_strided_slice %17 {offsets = [0, 3, 0], sizes = [2, 1, 64], strides = [1, 1, 1]} : vector<2x8x64xf32> to vector<2x1x64xf32>
    %84 = vector.shape_cast %83 : vector<2x1x64xf32> to vector<2x64xf32>
    %85 = arith.truncf %82 : vector<2x16xf32> to vector<2x16xbf16>
    %cst_19 = arith.constant dense<0.000000e+00> : vector<2x64xf32>
    %86 = tpu.matmul %85, %1, %cst_19 {dimension_numbers = #tpu.dot_dimension_numbers<[1], [0], [0], [1], [0, 0, 1, 1], [], []>} : vector<2x16xbf16>, vector<16x64xbf16>, vector<2x64xf32> -> vector<2x64xf32>
    %87 = arith.addf %84, %86 : vector<2x64xf32>
    %88 = vector.extract_strided_slice %87 {offsets = [0, 0], sizes = [2, 48], strides = [1, 1]} : vector<2x64xf32> to vector<2x48xf32>
    %89 = arith.negf %88 : vector<2x48xf32>
    %90 = math.exp %89 : vector<2x48xf32>
    %cst_20 = arith.constant 1.000000e+00 : f32
    %91 = vector.broadcast %cst_20 : f32 to vector<2x48xf32>
    %92 = arith.addf %91, %90 : vector<2x48xf32>
    %93 = arith.divf %91, %92 : vector<2x48xf32>
    %94 = vector.extract_strided_slice %87 {offsets = [0, 48], sizes = [2, 16], strides = [1, 1]} : vector<2x64xf32> to vector<2x16xf32>
    %95 = math.tanh %94 : vector<2x16xf32>
    %96 = vector.extract_strided_slice %93 {offsets = [0, 0], sizes = [2, 16], strides = [1, 1]} : vector<2x48xf32> to vector<2x16xf32>
    %97 = vector.extract_strided_slice %93 {offsets = [0, 16], sizes = [2, 16], strides = [1, 1]} : vector<2x48xf32> to vector<2x16xf32>
    %98 = vector.extract_strided_slice %93 {offsets = [0, 32], sizes = [2, 16], strides = [1, 1]} : vector<2x48xf32> to vector<2x16xf32>
    %99 = arith.mulf %97, %80 : vector<2x16xf32>
    %100 = arith.mulf %96, %95 : vector<2x16xf32>
    %101 = arith.addf %99, %100 : vector<2x16xf32>
    %102 = math.tanh %101 : vector<2x16xf32>
    %103 = arith.mulf %98, %102 : vector<2x16xf32>
    %104 = vector.extract_strided_slice %17 {offsets = [0, 4, 0], sizes = [2, 1, 64], strides = [1, 1, 1]} : vector<2x8x64xf32> to vector<2x1x64xf32>
    %105 = vector.shape_cast %104 : vector<2x1x64xf32> to vector<2x64xf32>
    %106 = arith.truncf %103 : vector<2x16xf32> to vector<2x16xbf16>
    %cst_21 = arith.constant dense<0.000000e+00> : vector<2x64xf32>
    %107 = tpu.matmul %106, %1, %cst_21 {dimension_numbers = #tpu.dot_dimension_numbers<[1], [0], [0], [1], [0, 0, 1, 1], [], []>} : vector<2x16xbf16>, vector<16x64xbf16>, vector<2x64xf32> -> vector<2x64xf32>
    %108 = arith.addf %105, %107 : vector<2x64xf32>
    %109 = vector.extract_strided_slice %108 {offsets = [0, 0], sizes = [2, 48], strides = [1, 1]} : vector<2x64xf32> to vector<2x48xf32>
    %110 = arith.negf %109 : vector<2x48xf32>
    %111 = math.exp %110 : vector<2x48xf32>
    %cst_22 = arith.constant 1.000000e+00 : f32
    %112 = vector.broadcast %cst_22 : f32 to vector<2x48xf32>
    %113 = arith.addf %112, %111 : vector<2x48xf32>
    %114 = arith.divf %112, %113 : vector<2x48xf32>
    %115 = vector.extract_strided_slice %108 {offsets = [0, 48], sizes = [2, 16], strides = [1, 1]} : vector<2x64xf32> to vector<2x16xf32>
    %116 = math.tanh %115 : vector<2x16xf32>
    %117 = vector.extract_strided_slice %114 {offsets = [0, 0], sizes = [2, 16], strides = [1, 1]} : vector<2x48xf32> to vector<2x16xf32>
    %118 = vector.extract_strided_slice %114 {offsets = [0, 16], sizes = [2, 16], strides = [1, 1]} : vector<2x48xf32> to vector<2x16xf32>
    %119 = vector.extract_strided_slice %114 {offsets = [0, 32], sizes = [2, 16], strides = [1, 1]} : vector<2x48xf32> to vector<2x16xf32>
    %120 = arith.mulf %118, %101 : vector<2x16xf32>
    %121 = arith.mulf %117, %116 : vector<2x16xf32>
    %122 = arith.addf %120, %121 : vector<2x16xf32>
    %123 = math.tanh %122 : vector<2x16xf32>
    %124 = arith.mulf %119, %123 : vector<2x16xf32>
    %125 = vector.extract_strided_slice %17 {offsets = [0, 5, 0], sizes = [2, 1, 64], strides = [1, 1, 1]} : vector<2x8x64xf32> to vector<2x1x64xf32>
    %126 = vector.shape_cast %125 : vector<2x1x64xf32> to vector<2x64xf32>
    %127 = arith.truncf %124 : vector<2x16xf32> to vector<2x16xbf16>
    %cst_23 = arith.constant dense<0.000000e+00> : vector<2x64xf32>
    %128 = tpu.matmul %127, %1, %cst_23 {dimension_numbers = #tpu.dot_dimension_numbers<[1], [0], [0], [1], [0, 0, 1, 1], [], []>} : vector<2x16xbf16>, vector<16x64xbf16>, vector<2x64xf32> -> vector<2x64xf32>
    %129 = arith.addf %126, %128 : vector<2x64xf32>
    %130 = vector.extract_strided_slice %129 {offsets = [0, 0], sizes = [2, 48], strides = [1, 1]} : vector<2x64xf32> to vector<2x48xf32>
    %131 = arith.negf %130 : vector<2x48xf32>
    %132 = math.exp %131 : vector<2x48xf32>
    %cst_24 = arith.constant 1.000000e+00 : f32
    %133 = vector.broadcast %cst_24 : f32 to vector<2x48xf32>
    %134 = arith.addf %133, %132 : vector<2x48xf32>
    %135 = arith.divf %133, %134 : vector<2x48xf32>
    %136 = vector.extract_strided_slice %129 {offsets = [0, 48], sizes = [2, 16], strides = [1, 1]} : vector<2x64xf32> to vector<2x16xf32>
    %137 = math.tanh %136 : vector<2x16xf32>
    %138 = vector.extract_strided_slice %135 {offsets = [0, 0], sizes = [2, 16], strides = [1, 1]} : vector<2x48xf32> to vector<2x16xf32>
    %139 = vector.extract_strided_slice %135 {offsets = [0, 16], sizes = [2, 16], strides = [1, 1]} : vector<2x48xf32> to vector<2x16xf32>
    %140 = vector.extract_strided_slice %135 {offsets = [0, 32], sizes = [2, 16], strides = [1, 1]} : vector<2x48xf32> to vector<2x16xf32>
    %141 = arith.mulf %139, %122 : vector<2x16xf32>
    %142 = arith.mulf %138, %137 : vector<2x16xf32>
    %143 = arith.addf %141, %142 : vector<2x16xf32>
    %144 = math.tanh %143 : vector<2x16xf32>
    %145 = arith.mulf %140, %144 : vector<2x16xf32>
    %146 = vector.extract_strided_slice %17 {offsets = [0, 6, 0], sizes = [2, 1, 64], strides = [1, 1, 1]} : vector<2x8x64xf32> to vector<2x1x64xf32>
    %147 = vector.shape_cast %146 : vector<2x1x64xf32> to vector<2x64xf32>
    %148 = arith.truncf %145 : vector<2x16xf32> to vector<2x16xbf16>
    %cst_25 = arith.constant dense<0.000000e+00> : vector<2x64xf32>
    %149 = tpu.matmul %148, %1, %cst_25 {dimension_numbers = #tpu.dot_dimension_numbers<[1], [0], [0], [1], [0, 0, 1, 1], [], []>} : vector<2x16xbf16>, vector<16x64xbf16>, vector<2x64xf32> -> vector<2x64xf32>
    %150 = arith.addf %147, %149 : vector<2x64xf32>
    %151 = vector.extract_strided_slice %150 {offsets = [0, 0], sizes = [2, 48], strides = [1, 1]} : vector<2x64xf32> to vector<2x48xf32>
    %152 = arith.negf %151 : vector<2x48xf32>
    %153 = math.exp %152 : vector<2x48xf32>
    %cst_26 = arith.constant 1.000000e+00 : f32
    %154 = vector.broadcast %cst_26 : f32 to vector<2x48xf32>
    %155 = arith.addf %154, %153 : vector<2x48xf32>
    %156 = arith.divf %154, %155 : vector<2x48xf32>
    %157 = vector.extract_strided_slice %150 {offsets = [0, 48], sizes = [2, 16], strides = [1, 1]} : vector<2x64xf32> to vector<2x16xf32>
    %158 = math.tanh %157 : vector<2x16xf32>
    %159 = vector.extract_strided_slice %156 {offsets = [0, 0], sizes = [2, 16], strides = [1, 1]} : vector<2x48xf32> to vector<2x16xf32>
    %160 = vector.extract_strided_slice %156 {offsets = [0, 16], sizes = [2, 16], strides = [1, 1]} : vector<2x48xf32> to vector<2x16xf32>
    %161 = vector.extract_strided_slice %156 {offsets = [0, 32], sizes = [2, 16], strides = [1, 1]} : vector<2x48xf32> to vector<2x16xf32>
    %162 = arith.mulf %160, %143 : vector<2x16xf32>
    %163 = arith.mulf %159, %158 : vector<2x16xf32>
    %164 = arith.addf %162, %163 : vector<2x16xf32>
    %165 = math.tanh %164 : vector<2x16xf32>
    %166 = arith.mulf %161, %165 : vector<2x16xf32>
    %167 = vector.extract_strided_slice %17 {offsets = [0, 7, 0], sizes = [2, 1, 64], strides = [1, 1, 1]} : vector<2x8x64xf32> to vector<2x1x64xf32>
    %168 = vector.shape_cast %167 : vector<2x1x64xf32> to vector<2x64xf32>
    %169 = arith.truncf %166 : vector<2x16xf32> to vector<2x16xbf16>
    %cst_27 = arith.constant dense<0.000000e+00> : vector<2x64xf32>
    %170 = tpu.matmul %169, %1, %cst_27 {dimension_numbers = #tpu.dot_dimension_numbers<[1], [0], [0], [1], [0, 0, 1, 1], [], []>} : vector<2x16xbf16>, vector<16x64xbf16>, vector<2x64xf32> -> vector<2x64xf32>
    %171 = arith.addf %168, %170 : vector<2x64xf32>
    %172 = vector.extract_strided_slice %171 {offsets = [0, 0], sizes = [2, 48], strides = [1, 1]} : vector<2x64xf32> to vector<2x48xf32>
    %173 = arith.negf %172 : vector<2x48xf32>
    %174 = math.exp %173 : vector<2x48xf32>
    %cst_28 = arith.constant 1.000000e+00 : f32
    %175 = vector.broadcast %cst_28 : f32 to vector<2x48xf32>
    %176 = arith.addf %175, %174 : vector<2x48xf32>
    %177 = arith.divf %175, %176 : vector<2x48xf32>
    %178 = vector.extract_strided_slice %171 {offsets = [0, 48], sizes = [2, 16], strides = [1, 1]} : vector<2x64xf32> to vector<2x16xf32>
    %179 = math.tanh %178 : vector<2x16xf32>
    %180 = vector.extract_strided_slice %177 {offsets = [0, 0], sizes = [2, 16], strides = [1, 1]} : vector<2x48xf32> to vector<2x16xf32>
    %181 = vector.extract_strided_slice %177 {offsets = [0, 16], sizes = [2, 16], strides = [1, 1]} : vector<2x48xf32> to vector<2x16xf32>
    %182 = vector.extract_strided_slice %177 {offsets = [0, 32], sizes = [2, 16], strides = [1, 1]} : vector<2x48xf32> to vector<2x16xf32>
    %183 = arith.mulf %181, %164 : vector<2x16xf32>
    %184 = arith.mulf %180, %179 : vector<2x16xf32>
    %185 = arith.addf %183, %184 : vector<2x16xf32>
    %186 = math.tanh %185 : vector<2x16xf32>
    %187 = arith.mulf %182, %186 : vector<2x16xf32>
    %188 = arith.truncf %187 : vector<2x16xf32> to vector<2x16xbf16>
    %cst_29 = arith.constant dense<0.000000e+00> : vector<2x16xf32>
    %189 = tpu.matmul %188, %2, %cst_29 {dimension_numbers = #tpu.dot_dimension_numbers<[1], [0], [0], [1], [0, 0, 1, 1], [], []>} : vector<2x16xbf16>, vector<16x16xbf16>, vector<2x16xf32> -> vector<2x16xf32>
    %190 = vector.broadcast %8 : vector<1x16xf32> to vector<2x16xf32>
    %191 = arith.addf %189, %190 : vector<2x16xf32>
    %192 = arith.truncf %191 : vector<2x16xf32> to vector<2x16xbf16>
    %cst_30 = arith.constant dense<0.000000e+00> : vector<2x32xf32>
    %193 = tpu.matmul %192, %3, %cst_30 {dimension_numbers = #tpu.dot_dimension_numbers<[1], [0], [0], [1], [0, 0, 1, 1], [], []>} : vector<2x16xbf16>, vector<16x32xbf16>, vector<2x32xf32> -> vector<2x32xf32>
    %194 = vector.broadcast %10 : vector<1x32xf32> to vector<2x32xf32>
    %195 = arith.addf %193, %194 : vector<2x32xf32>
    %cst_31 = arith.constant 0.000000e+00 : f32
    %196 = vector.broadcast %cst_31 : f32 to vector<2x8xf32>
    %cst_32 = arith.constant 0.000000e+00 : f32
    %197 = vector.broadcast %cst_32 : f32 to vector<2x8xf32>
    %198 = arith.truncf %196 : vector<2x8xf32> to vector<2x8xbf16>
    %cst_33 = arith.constant dense<0.000000e+00> : vector<2x32xf32>
    %199 = tpu.matmul %198, %4, %cst_33 {dimension_numbers = #tpu.dot_dimension_numbers<[1], [0], [0], [1], [0, 0, 1, 1], [], []>} : vector<2x8xbf16>, vector<8x32xbf16>, vector<2x32xf32> -> vector<2x32xf32>
    %200 = arith.addf %195, %199 : vector<2x32xf32>
    %201 = vector.extract_strided_slice %200 {offsets = [0, 0], sizes = [2, 24], strides = [1, 1]} : vector<2x32xf32> to vector<2x24xf32>
    %202 = arith.negf %201 : vector<2x24xf32>
    %203 = math.exp %202 : vector<2x24xf32>
    %cst_34 = arith.constant 1.000000e+00 : f32
    %204 = vector.broadcast %cst_34 : f32 to vector<2x24xf32>
    %205 = arith.addf %204, %203 : vector<2x24xf32>
    %206 = arith.divf %204, %205 : vector<2x24xf32>
    %207 = vector.extract_strided_slice %200 {offsets = [0, 24], sizes = [2, 8], strides = [1, 1]} : vector<2x32xf32> to vector<2x8xf32>
    %208 = math.tanh %207 : vector<2x8xf32>
    %209 = vector.extract_strided_slice %206 {offsets = [0, 0], sizes = [2, 8], strides = [1, 1]} : vector<2x24xf32> to vector<2x8xf32>
    %210 = vector.extract_strided_slice %206 {offsets = [0, 8], sizes = [2, 8], strides = [1, 1]} : vector<2x24xf32> to vector<2x8xf32>
    %211 = vector.extract_strided_slice %206 {offsets = [0, 16], sizes = [2, 8], strides = [1, 1]} : vector<2x24xf32> to vector<2x8xf32>
    %212 = arith.mulf %210, %197 : vector<2x8xf32>
    %213 = arith.mulf %209, %208 : vector<2x8xf32>
    %214 = arith.addf %212, %213 : vector<2x8xf32>
    %215 = math.tanh %214 : vector<2x8xf32>
    %216 = arith.mulf %211, %215 : vector<2x8xf32>
    %217 = arith.truncf %216 : vector<2x8xf32> to vector<2x8xbf16>
    %cst_35 = arith.constant dense<0.000000e+00> : vector<2x32xf32>
    %218 = tpu.matmul %217, %4, %cst_35 {dimension_numbers = #tpu.dot_dimension_numbers<[1], [0], [0], [1], [0, 0, 1, 1], [], []>} : vector<2x8xbf16>, vector<8x32xbf16>, vector<2x32xf32> -> vector<2x32xf32>
    %219 = arith.addf %195, %218 : vector<2x32xf32>
    %220 = vector.extract_strided_slice %219 {offsets = [0, 0], sizes = [2, 24], strides = [1, 1]} : vector<2x32xf32> to vector<2x24xf32>
    %221 = arith.negf %220 : vector<2x24xf32>
    %222 = math.exp %221 : vector<2x24xf32>
    %cst_36 = arith.constant 1.000000e+00 : f32
    %223 = vector.broadcast %cst_36 : f32 to vector<2x24xf32>
    %224 = arith.addf %223, %222 : vector<2x24xf32>
    %225 = arith.divf %223, %224 : vector<2x24xf32>
    %226 = vector.extract_strided_slice %219 {offsets = [0, 24], sizes = [2, 8], strides = [1, 1]} : vector<2x32xf32> to vector<2x8xf32>
    %227 = math.tanh %226 : vector<2x8xf32>
    %228 = vector.extract_strided_slice %225 {offsets = [0, 0], sizes = [2, 8], strides = [1, 1]} : vector<2x24xf32> to vector<2x8xf32>
    %229 = vector.extract_strided_slice %225 {offsets = [0, 8], sizes = [2, 8], strides = [1, 1]} : vector<2x24xf32> to vector<2x8xf32>
    %230 = vector.extract_strided_slice %225 {offsets = [0, 16], sizes = [2, 8], strides = [1, 1]} : vector<2x24xf32> to vector<2x8xf32>
    %231 = arith.mulf %229, %214 : vector<2x8xf32>
    %232 = arith.mulf %228, %227 : vector<2x8xf32>
    %233 = arith.addf %231, %232 : vector<2x8xf32>
    %234 = math.tanh %233 : vector<2x8xf32>
    %235 = arith.mulf %230, %234 : vector<2x8xf32>
    %236 = arith.truncf %235 : vector<2x8xf32> to vector<2x8xbf16>
    %cst_37 = arith.constant dense<0.000000e+00> : vector<2x32xf32>
    %237 = tpu.matmul %236, %4, %cst_37 {dimension_numbers = #tpu.dot_dimension_numbers<[1], [0], [0], [1], [0, 0, 1, 1], [], []>} : vector<2x8xbf16>, vector<8x32xbf16>, vector<2x32xf32> -> vector<2x32xf32>
    %238 = arith.addf %195, %237 : vector<2x32xf32>
    %239 = vector.extract_strided_slice %238 {offsets = [0, 0], sizes = [2, 24], strides = [1, 1]} : vector<2x32xf32> to vector<2x24xf32>
    %240 = arith.negf %239 : vector<2x24xf32>
    %241 = math.exp %240 : vector<2x24xf32>
    %cst_38 = arith.constant 1.000000e+00 : f32
    %242 = vector.broadcast %cst_38 : f32 to vector<2x24xf32>
    %243 = arith.addf %242, %241 : vector<2x24xf32>
    %244 = arith.divf %242, %243 : vector<2x24xf32>
    %245 = vector.extract_strided_slice %238 {offsets = [0, 24], sizes = [2, 8], strides = [1, 1]} : vector<2x32xf32> to vector<2x8xf32>
    %246 = math.tanh %245 : vector<2x8xf32>
    %247 = vector.extract_strided_slice %244 {offsets = [0, 0], sizes = [2, 8], strides = [1, 1]} : vector<2x24xf32> to vector<2x8xf32>
    %248 = vector.extract_strided_slice %244 {offsets = [0, 8], sizes = [2, 8], strides = [1, 1]} : vector<2x24xf32> to vector<2x8xf32>
    %249 = vector.extract_strided_slice %244 {offsets = [0, 16], sizes = [2, 8], strides = [1, 1]} : vector<2x24xf32> to vector<2x8xf32>
    %250 = arith.mulf %248, %233 : vector<2x8xf32>
    %251 = arith.mulf %247, %246 : vector<2x8xf32>
    %252 = arith.addf %250, %251 : vector<2x8xf32>
    %253 = math.tanh %252 : vector<2x8xf32>
    %254 = arith.mulf %249, %253 : vector<2x8xf32>
    %255 = arith.truncf %254 : vector<2x8xf32> to vector<2x8xbf16>
    %cst_39 = arith.constant dense<0.000000e+00> : vector<2x32xf32>
    %256 = tpu.matmul %255, %4, %cst_39 {dimension_numbers = #tpu.dot_dimension_numbers<[1], [0], [0], [1], [0, 0, 1, 1], [], []>} : vector<2x8xbf16>, vector<8x32xbf16>, vector<2x32xf32> -> vector<2x32xf32>
    %257 = arith.addf %195, %256 : vector<2x32xf32>
    %258 = vector.extract_strided_slice %257 {offsets = [0, 0], sizes = [2, 24], strides = [1, 1]} : vector<2x32xf32> to vector<2x24xf32>
    %259 = arith.negf %258 : vector<2x24xf32>
    %260 = math.exp %259 : vector<2x24xf32>
    %cst_40 = arith.constant 1.000000e+00 : f32
    %261 = vector.broadcast %cst_40 : f32 to vector<2x24xf32>
    %262 = arith.addf %261, %260 : vector<2x24xf32>
    %263 = arith.divf %261, %262 : vector<2x24xf32>
    %264 = vector.extract_strided_slice %257 {offsets = [0, 24], sizes = [2, 8], strides = [1, 1]} : vector<2x32xf32> to vector<2x8xf32>
    %265 = math.tanh %264 : vector<2x8xf32>
    %266 = vector.extract_strided_slice %263 {offsets = [0, 0], sizes = [2, 8], strides = [1, 1]} : vector<2x24xf32> to vector<2x8xf32>
    %267 = vector.extract_strided_slice %263 {offsets = [0, 8], sizes = [2, 8], strides = [1, 1]} : vector<2x24xf32> to vector<2x8xf32>
    %268 = vector.extract_strided_slice %263 {offsets = [0, 16], sizes = [2, 8], strides = [1, 1]} : vector<2x24xf32> to vector<2x8xf32>
    %269 = arith.mulf %267, %252 : vector<2x8xf32>
    %270 = arith.mulf %266, %265 : vector<2x8xf32>
    %271 = arith.addf %269, %270 : vector<2x8xf32>
    %272 = math.tanh %271 : vector<2x8xf32>
    %273 = arith.mulf %268, %272 : vector<2x8xf32>
    %274 = arith.truncf %273 : vector<2x8xf32> to vector<2x8xbf16>
    %cst_41 = arith.constant dense<0.000000e+00> : vector<2x32xf32>
    %275 = tpu.matmul %274, %4, %cst_41 {dimension_numbers = #tpu.dot_dimension_numbers<[1], [0], [0], [1], [0, 0, 1, 1], [], []>} : vector<2x8xbf16>, vector<8x32xbf16>, vector<2x32xf32> -> vector<2x32xf32>
    %276 = arith.addf %195, %275 : vector<2x32xf32>
    %277 = vector.extract_strided_slice %276 {offsets = [0, 0], sizes = [2, 24], strides = [1, 1]} : vector<2x32xf32> to vector<2x24xf32>
    %278 = arith.negf %277 : vector<2x24xf32>
    %279 = math.exp %278 : vector<2x24xf32>
    %cst_42 = arith.constant 1.000000e+00 : f32
    %280 = vector.broadcast %cst_42 : f32 to vector<2x24xf32>
    %281 = arith.addf %280, %279 : vector<2x24xf32>
    %282 = arith.divf %280, %281 : vector<2x24xf32>
    %283 = vector.extract_strided_slice %276 {offsets = [0, 24], sizes = [2, 8], strides = [1, 1]} : vector<2x32xf32> to vector<2x8xf32>
    %284 = math.tanh %283 : vector<2x8xf32>
    %285 = vector.extract_strided_slice %282 {offsets = [0, 0], sizes = [2, 8], strides = [1, 1]} : vector<2x24xf32> to vector<2x8xf32>
    %286 = vector.extract_strided_slice %282 {offsets = [0, 8], sizes = [2, 8], strides = [1, 1]} : vector<2x24xf32> to vector<2x8xf32>
    %287 = vector.extract_strided_slice %282 {offsets = [0, 16], sizes = [2, 8], strides = [1, 1]} : vector<2x24xf32> to vector<2x8xf32>
    %288 = arith.mulf %286, %271 : vector<2x8xf32>
    %289 = arith.mulf %285, %284 : vector<2x8xf32>
    %290 = arith.addf %288, %289 : vector<2x8xf32>
    %291 = math.tanh %290 : vector<2x8xf32>
    %292 = arith.mulf %287, %291 : vector<2x8xf32>
    %293 = arith.truncf %292 : vector<2x8xf32> to vector<2x8xbf16>
    %cst_43 = arith.constant dense<0.000000e+00> : vector<2x32xf32>
    %294 = tpu.matmul %293, %4, %cst_43 {dimension_numbers = #tpu.dot_dimension_numbers<[1], [0], [0], [1], [0, 0, 1, 1], [], []>} : vector<2x8xbf16>, vector<8x32xbf16>, vector<2x32xf32> -> vector<2x32xf32>
    %295 = arith.addf %195, %294 : vector<2x32xf32>
    %296 = vector.extract_strided_slice %295 {offsets = [0, 0], sizes = [2, 24], strides = [1, 1]} : vector<2x32xf32> to vector<2x24xf32>
    %297 = arith.negf %296 : vector<2x24xf32>
    %298 = math.exp %297 : vector<2x24xf32>
    %cst_44 = arith.constant 1.000000e+00 : f32
    %299 = vector.broadcast %cst_44 : f32 to vector<2x24xf32>
    %300 = arith.addf %299, %298 : vector<2x24xf32>
    %301 = arith.divf %299, %300 : vector<2x24xf32>
    %302 = vector.extract_strided_slice %295 {offsets = [0, 24], sizes = [2, 8], strides = [1, 1]} : vector<2x32xf32> to vector<2x8xf32>
    %303 = math.tanh %302 : vector<2x8xf32>
    %304 = vector.extract_strided_slice %301 {offsets = [0, 0], sizes = [2, 8], strides = [1, 1]} : vector<2x24xf32> to vector<2x8xf32>
    %305 = vector.extract_strided_slice %301 {offsets = [0, 8], sizes = [2, 8], strides = [1, 1]} : vector<2x24xf32> to vector<2x8xf32>
    %306 = vector.extract_strided_slice %301 {offsets = [0, 16], sizes = [2, 8], strides = [1, 1]} : vector<2x24xf32> to vector<2x8xf32>
    %307 = arith.mulf %305, %290 : vector<2x8xf32>
    %308 = arith.mulf %304, %303 : vector<2x8xf32>
    %309 = arith.addf %307, %308 : vector<2x8xf32>
    %310 = math.tanh %309 : vector<2x8xf32>
    %311 = arith.mulf %306, %310 : vector<2x8xf32>
    %312 = arith.truncf %311 : vector<2x8xf32> to vector<2x8xbf16>
    %cst_45 = arith.constant dense<0.000000e+00> : vector<2x32xf32>
    %313 = tpu.matmul %312, %4, %cst_45 {dimension_numbers = #tpu.dot_dimension_numbers<[1], [0], [0], [1], [0, 0, 1, 1], [], []>} : vector<2x8xbf16>, vector<8x32xbf16>, vector<2x32xf32> -> vector<2x32xf32>
    %314 = arith.addf %195, %313 : vector<2x32xf32>
    %315 = vector.extract_strided_slice %314 {offsets = [0, 0], sizes = [2, 24], strides = [1, 1]} : vector<2x32xf32> to vector<2x24xf32>
    %316 = arith.negf %315 : vector<2x24xf32>
    %317 = math.exp %316 : vector<2x24xf32>
    %cst_46 = arith.constant 1.000000e+00 : f32
    %318 = vector.broadcast %cst_46 : f32 to vector<2x24xf32>
    %319 = arith.addf %318, %317 : vector<2x24xf32>
    %320 = arith.divf %318, %319 : vector<2x24xf32>
    %321 = vector.extract_strided_slice %314 {offsets = [0, 24], sizes = [2, 8], strides = [1, 1]} : vector<2x32xf32> to vector<2x8xf32>
    %322 = math.tanh %321 : vector<2x8xf32>
    %323 = vector.extract_strided_slice %320 {offsets = [0, 0], sizes = [2, 8], strides = [1, 1]} : vector<2x24xf32> to vector<2x8xf32>
    %324 = vector.extract_strided_slice %320 {offsets = [0, 8], sizes = [2, 8], strides = [1, 1]} : vector<2x24xf32> to vector<2x8xf32>
    %325 = vector.extract_strided_slice %320 {offsets = [0, 16], sizes = [2, 8], strides = [1, 1]} : vector<2x24xf32> to vector<2x8xf32>
    %326 = arith.mulf %324, %309 : vector<2x8xf32>
    %327 = arith.mulf %323, %322 : vector<2x8xf32>
    %328 = arith.addf %326, %327 : vector<2x8xf32>
    %329 = math.tanh %328 : vector<2x8xf32>
    %330 = arith.mulf %325, %329 : vector<2x8xf32>
    %331 = arith.truncf %330 : vector<2x8xf32> to vector<2x8xbf16>
    %cst_47 = arith.constant dense<0.000000e+00> : vector<2x32xf32>
    %332 = tpu.matmul %331, %4, %cst_47 {dimension_numbers = #tpu.dot_dimension_numbers<[1], [0], [0], [1], [0, 0, 1, 1], [], []>} : vector<2x8xbf16>, vector<8x32xbf16>, vector<2x32xf32> -> vector<2x32xf32>
    %333 = arith.addf %195, %332 : vector<2x32xf32>
    %334 = vector.extract_strided_slice %333 {offsets = [0, 0], sizes = [2, 24], strides = [1, 1]} : vector<2x32xf32> to vector<2x24xf32>
    %335 = arith.negf %334 : vector<2x24xf32>
    %336 = math.exp %335 : vector<2x24xf32>
    %cst_48 = arith.constant 1.000000e+00 : f32
    %337 = vector.broadcast %cst_48 : f32 to vector<2x24xf32>
    %338 = arith.addf %337, %336 : vector<2x24xf32>
    %339 = arith.divf %337, %338 : vector<2x24xf32>
    %340 = vector.extract_strided_slice %333 {offsets = [0, 24], sizes = [2, 8], strides = [1, 1]} : vector<2x32xf32> to vector<2x8xf32>
    %341 = math.tanh %340 : vector<2x8xf32>
    %342 = vector.extract_strided_slice %339 {offsets = [0, 0], sizes = [2, 8], strides = [1, 1]} : vector<2x24xf32> to vector<2x8xf32>
    %343 = vector.extract_strided_slice %339 {offsets = [0, 8], sizes = [2, 8], strides = [1, 1]} : vector<2x24xf32> to vector<2x8xf32>
    %344 = vector.extract_strided_slice %339 {offsets = [0, 16], sizes = [2, 8], strides = [1, 1]} : vector<2x24xf32> to vector<2x8xf32>
    %345 = arith.mulf %343, %328 : vector<2x8xf32>
    %346 = arith.mulf %342, %341 : vector<2x8xf32>
    %347 = arith.addf %345, %346 : vector<2x8xf32>
    %348 = math.tanh %347 : vector<2x8xf32>
    %349 = arith.mulf %344, %348 : vector<2x8xf32>
    %350 = tpu.concatenate %216, %235, %254, %273, %292, %311, %330, %349 in 1 : vector<2x8xf32>, vector<2x8xf32>, vector<2x8xf32>, vector<2x8xf32>, vector<2x8xf32>, vector<2x8xf32>, vector<2x8xf32>, vector<2x8xf32> -> vector<2x64xf32>
    %c0_49 = arith.constant 0 : index
    %c0_50 = arith.constant 0 : index
    %351 = vector.load %arg2[%c0_49, %c0_50] : memref<2x64xf32, #tpu.memory_space<vmem>>, vector<2x64xf32>
    tpu.vector_store %arg2[%c0_49, %c0_50], %350 {strides = array<i32>} : memref<2x64xf32, #tpu.memory_space<vmem>>, vector<2x64xf32>,
    return
  }
}

</mosaic_0001>

<llo_original>
// kernel: tpu_custom_call.1
$region0: #{tpu_custom_call.1}
  #allocation0 [shape = 'u32[]', space=smem, size = 0x4, offset = 0x4, fixed_abs, tag = 'smem constant byte address 0x4 - core index']
  #allocation1 [shape = 'u32[144,128]{1,0:T(1,128)}', space=vmem, size = 0x12000, scoped, tag = 'internal scratch']
  %s0 = inlined_call_operand.vmem [shape: f32[2,8,8], index: 0, kind: input, shape index: {}]
  %s1 = inlined_call_operand.vmem [shape: bf16[128,64], index: 1, kind: input, shape index: {}]
  %s2 = inlined_call_operand.hbm [shape: f32[2,64], index: 2, kind: output, shape index: {}]
  %s3 = sld [smem:[#allocation0]]
  $region18: #{tpu_custom_call.1} parent=0
    _
  %s5 = ssub.s32 1, %s3
  %s6 = scalar_select 0, %s5, %s3
  $region1: #{tpu_custom_call.1} parent=0
    #allocation2 [shape = 'u8[1024]{0}', space=vmem, size = 0x400, scoped, tag = 'output window, operand 0, single buffered']
    #allocation3 [shape = 's32[1]{0}', space=sflag, size = 0x4, scoped, tag = 'scoped memory for tpu_custom_call.1']
    %7 = vsyncpa [#allocation3], 0
    // Predicated region
    $region2: #{tpu_custom_call.1} parent=1 // pred_check
      _
    $region3: #{tpu_custom_call.1} parent=1 // pred_check_branch
      %9 = sbr.rel (0) target = $region5
    $region4: #{tpu_custom_call.1} parent=1 // pred_region
      _
    $region5: #{tpu_custom_call.1} parent=1 // pred_fallthru
      _
    // Predicated region
    $region6: #{tpu_custom_call.1} parent=1 // pred_check
      _
    $region7: #{tpu_custom_call.1} parent=1 // pred_check_branch
      %11 = sbr.rel (0) target = $region9
    $region8: #{tpu_custom_call.1} parent=1 // pred_region
      _
    $region9: #{tpu_custom_call.1} parent=1 // pred_fallthru
      _
    %v13 = vld [vmem:[%s1] sm:$0xf]
    %v14 = vld [vmem:[%s1 + $0x8] sm:$0xf]
    %v15 = vld [vmem:[%s1 + $0xc] sm:$0xf]
    %v16 = vld [vmem:[%s1 + $0x18] sm:$0xf]
    %v17 = vld [vmem:[%s1 + $0x1c] sm:$0xf]
    %v18 = vld [vmem:[%s1 + $0x28] sm:$0xf]
    %v19 = vld [vmem:[%s1 + $0x2c] sm:$0xf]
    %v20 = vld [vmem:[%s1 + $0x30] sm:$0xf]
    %v21 = vld [vmem:[%s1 + $0x10] sm:$0x1]
    %v22 = vunpack.c.l.bf16 %v21
    %v23 = vld [vmem:[%s1 + $0x20] sm:$0x1]
    %v24 = vunpack.c.l.bf16 %v23
    %v25 = vld [vmem:[%s1 + $0x38] sm:$0x1]
    %v26 = vunpack.c.l.bf16 %v25
    %v27 = vld [vmem:[%s0] sm:$0xff]
    %v28 = vld [vmem:[%s0 + $0x8] sm:$0xff]
    %v29 = vpack.c.bf16 %v28, %v27
    %v30 = vlaneseq
    %v31 = vshrl.u32 %v30, 7
    %v32 = vsub.s32 0, %v31
    %v33 = vrot.slane %v22, %v32
    %vm34 = vcmask 64512
    %v36 = vsel %vm34, %v29, 0
    %vm38 = vcmask 1043456
    %v40 = vsel %vm38, %v13, 0
    %42 = vmatprep.subr.bf16.mxu0 0
    %43 = vmatpush1.bf16.msra.mxu0 0
    %44 = vmatprep.subr.bf16.mxu0 0
    %45 = vmatpush1.bf16.msra.mxu0 0
    %46 = vmatprep.subr.bf16.mxu0 0
    %47 = vmatpush1.bf16.msra.mxu0 0
    %48 = vmatprep.subr.bf16.mxu0 0
    %49 = vmatpush1.bf16.msra.mxu0 0
    %50 = vmatprep.subr.bf16.mxu0 0
    %51 = vmatpush1.bf16.msra.mxu0 0
    %52 = vmatprep.subr.bf16.mxu0 0
    %53 = vmatpush1.bf16.msra.mxu0 0
    %54 = vmatprep.subr.bf16.mxu0 0
    %55 = vmatpush1.bf16.msra.mxu0 0
    %56 = vmatprep.subr.bf16.mxu0 0
    %57 = vmatpush1.bf16.msra.mxu0 %v40
    %58 = vmatprep.subr.bf16.mxu0 0
    %59 = vmatpush2.bf16.msra.mxu0 0
    %60 = vmatprep.subr.bf16.mxu0 0
    %61 = vmatpush2.bf16.msra.mxu0 0
    %62 = vmatprep.subr.bf16.mxu0 0
    %63 = vmatpush2.bf16.msra.mxu0 0
    %64 = vmatprep.subr.bf16.mxu0 0
    %65 = vmatpush2.bf16.msra.mxu0 0
    %66 = vmatprep.subr.bf16.mxu0 0
    %67 = vmatpush2.bf16.msra.mxu0 0
    %68 = vmatprep.subr.bf16.mxu0 0
    %69 = vmatpush2.bf16.msra.mxu0 0
    %70 = vmatprep.subr.bf16.mxu0 0
    %71 = vmatpush2.bf16.msra.mxu0 0
    %72 = vmatprep.subr.bf16.mxu0 0
    %73 = vmatpush2.bf16.msra.mxu0 0
    %74 = vmatprep.mubr.bf16.mxu0 0
    %75 = vmatmul.mubr.bf16.gmra.mxu0 %v36
    %v76 = vpop.f32.mrf.mxu0
    %v77 = vadd.f32 %v33, %v76
    %v78 = vpop.f32.mrf.mxu0
    %v79 = vpop.f32.mrf.mxu0
    %v80 = vadd.f32 %v33, %v79
    %v81 = vpop.f32.mrf.mxu0
    %82 = vdwg.mxu0
    %v85 = vunpack.c.l.b16 %v14
    %v86 = vunpack.c.l.b16 %v15
    %v87 = vpack.c.b16 %v86, %v85
    %vm89 = vcmask 130048
    %v91 = vsel %vm89, 0, 0
    %93 = vmatprep.subr.bf16.mxu0 0
    %94 = vmatpush1.bf16.msra.mxu0 0
    %95 = vmatprep.subr.bf16.mxu0 0
    %96 = vmatpush1.bf16.msra.mxu0 0
    %97 = vmatprep.subr.bf16.mxu0 0
    %98 = vmatpush1.bf16.msra.mxu0 0
    %99 = vmatprep.subr.bf16.mxu0 0
    %100 = vmatpush1.bf16.msra.mxu0 0
    %101 = vmatprep.subr.bf16.mxu0 0
    %102 = vmatpush1.bf16.msra.mxu0 0
    %103 = vmatprep.subr.bf16.mxu0 0
    %104 = vmatpush1.bf16.msra.mxu0 0
    %105 = vmatprep.subr.bf16.mxu0 0
    %106 = vmatpush1.bf16.msra.mxu0 0
    %107 = vmatprep.subr.bf16.mxu0 0
    %108 = vmatpush1.bf16.msra.mxu0 %v87
    %109 = vmatprep.subr.bf16.mxu0 0
    %110 = vmatpush2.bf16.msra.mxu0 0
    %111 = vmatprep.subr.bf16.mxu0 0
    %112 = vmatpush2.bf16.msra.mxu0 0
    %113 = vmatprep.subr.bf16.mxu0 0
    %114 = vmatpush2.bf16.msra.mxu0 0
    %115 = vmatprep.subr.bf16.mxu0 0
    %116 = vmatpush2.bf16.msra.mxu0 0
    %117 = vmatprep.subr.bf16.mxu0 0
    %118 = vmatpush2.bf16.msra.mxu0 0
    %119 = vmatprep.subr.bf16.mxu0 0
    %120 = vmatpush2.bf16.msra.mxu0 0
    %121 = vmatprep.subr.bf16.mxu0 0
    %122 = vmatpush2.bf16.msra.mxu0 0
    %123 = vmatprep.subr.bf16.mxu0 0
    %124 = vmatpush2.bf16.msra.mxu0 0
    %125 = vmatprep.mubr.bf16.mxu0 0
    %126 = vmatmul.mubr.bf16.gmra.mxu0 %v91
    %v127 = vpop.f32.mrf.mxu0
    %v128 = vadd.f32 0.0, %v127
    %v129 = vpop.f32.mrf.mxu0
    %v130 = vpop.f32.mrf.mxu0
    %v131 = vpop.f32.mrf.mxu0
    %132 = vdwg.mxu0
    %v134 = vrot.slane %v128, 1
    %v137 = vadd.f32 %v77, %v128
    %v138 = vadd.f32 %v80, %v134
    %v139 = vxor.u32 %v137, 2147483648
    %v140 = vxor.u32 %v138, 2147483648
    %v141 = vmul.f32 %v139, 1.442695
    %v142 = vpow.pop %v141
    %v143 = vmul.f32 %v140, 1.442695
    %v144 = vpow.pop %v143
    %v145 = vadd.f32 %v142, 1.0
    %v146 = vadd.f32 %v144, 1.0
    %v147 = vrcp.pop %v145
    %v148 = vmul.f32 1.0, %v147
    %v149 = vrcp.pop %v146
    %v150 = vmul.f32 1.0, %v149
    %v151 = vtanh.pop %v137
    %v152 = vtanh.pop %v138
    %v153 = vmul.f32 %v148, 0.0
    %v154 = vmul.f32 %v150, 0.0
    %157 = vrot.lane.b32.xlu0 %v151, 80
    %v158 = vpop.permute.xlu0 %157
    %159 = vrot.lane.b32.xlu0 %v152, 80
    %v160 = vpop.permute.xlu0 %159
    %v163 = vmul.f32 %v148, %v158
    %v164 = vmul.f32 %v150, %v160
    %167 = vrot.lane.b32.xlu0 %v163, 16
    %v168 = vpop.permute.xlu0 %167
    %169 = vrot.lane.b32.xlu0 %v164, 16
    %v170 = vpop.permute.xlu0 %169
    %v173 = vadd.f32 %v153, %v168
    %v174 = vadd.f32 %v154, %v170
    %v175 = vtanh.pop %v173
    %v176 = vtanh.pop %v174
    %179 = vrot.lane.b32.xlu0 %v175, 16
    %v180 = vpop.permute.xlu0 %179
    %181 = vrot.lane.b32.xlu0 %v176, 16
    %v182 = vpop.permute.xlu0 %181
    %v185 = vmul.f32 %v148, %v180
    %v186 = vmul.f32 %v150, %v182
    %v187 = vpack.c.bf16 %v185, %v185
    %v188 = vpack.c.bf16 %v186, %v186
    %v191 = vunpack.c.l.b16 %v187
    %v192 = vunpack.c.l.b16 %v188
    %v193 = vrot.slane %v192, 7
    %vm194 = vcmask 1041409
    %v195 = vsel %vm194, %v193, %v191
    %v196 = vpack.c.b16 %v195, %v195
    %197 = vrot.lane.b32.xlu0 %v196, 96
    %v198 = vpop.permute.xlu0 %197
    %v200 = vsel %vm89, %v198, 0
    %202 = vmatprep.subr.bf16.mxu0 0
    %203 = vmatpush1.bf16.msra.mxu0 0
    %204 = vmatprep.subr.bf16.mxu0 0
    %205 = vmatpush1.bf16.msra.mxu0 0
    %206 = vmatprep.subr.bf16.mxu0 0
    %207 = vmatpush1.bf16.msra.mxu0 0
    %208 = vmatprep.subr.bf16.mxu0 0
    %209 = vmatpush1.bf16.msra.mxu0 0
    %210 = vmatprep.subr.bf16.mxu0 0
    %211 = vmatpush1.bf16.msra.mxu0 0
    %212 = vmatprep.subr.bf16.mxu0 0
    %213 = vmatpush1.bf16.msra.mxu0 0
    %214 = vmatprep.subr.bf16.mxu0 0
    %215 = vmatpush1.bf16.msra.mxu0 0
    %216 = vmatprep.subr.bf16.mxu0 0
    %217 = vmatpush1.bf16.msra.mxu0 %v87
    %218 = vmatprep.subr.bf16.mxu0 0
    %219 = vmatpush2.bf16.msra.mxu0 0
    %220 = vmatprep.subr.bf16.mxu0 0
    %221 = vmatpush2.bf16.msra.mxu0 0
    %222 = vmatprep.subr.bf16.mxu0 0
    %223 = vmatpush2.bf16.msra.mxu0 0
    %224 = vmatprep.subr.bf16.mxu0 0
    %225 = vmatpush2.bf16.msra.mxu0 0
    %226 = vmatprep.subr.bf16.mxu0 0
    %227 = vmatpush2.bf16.msra.mxu0 0
    %228 = vmatprep.subr.bf16.mxu0 0
    %229 = vmatpush2.bf16.msra.mxu0 0
    %230 = vmatprep.subr.bf16.mxu0 0
    %231 = vmatpush2.bf16.msra.mxu0 0
    %232 = vmatprep.subr.bf16.mxu0 0
    %233 = vmatpush2.bf16.msra.mxu0 0
    %234 = vmatprep.mubr.bf16.mxu0 0
    %235 = vmatmul.mubr.bf16.gmra.mxu0 %v200
    %v236 = vpop.f32.mrf.mxu0
    %v237 = vadd.f32 0.0, %v236
    %v238 = vpop.f32.mrf.mxu0
    %v239 = vpop.f32.mrf.mxu0
    %v240 = vpop.f32.mrf.mxu0
    %241 = vdwg.mxu0
    %v243 = vrot.slane %v237, 7
    %v246 = vadd.f32 %v77, %v243
    %v247 = vadd.f32 %v80, %v237
    %v248 = vxor.u32 %v246, 2147483648
    %v249 = vxor.u32 %v247, 2147483648
    %v250 = vmul.f32 %v248, 1.442695
    %v251 = vpow.pop %v250
    %v252 = vmul.f32 %v249, 1.442695
    %v253 = vpow.pop %v252
    %v254 = vadd.f32 %v251, 1.0
    %v255 = vadd.f32 %v253, 1.0
    %v256 = vrcp.pop %v254
    %v257 = vmul.f32 1.0, %v256
    %v258 = vrcp.pop %v255
    %v259 = vmul.f32 1.0, %v258
    %v260 = vtanh.pop %v246
    %v261 = vtanh.pop %v247
    %v264 = vrot.slane %v173, 7
    %v265 = vrot.slane %v174, 7
    %v268 = vmul.f32 %v257, %v264
    %v269 = vmul.f32 %v259, %v265
    %272 = vrot.lane.b32.xlu0 %v260, 80
    %v273 = vpop.permute.xlu0 %272
    %274 = vrot.lane.b32.xlu0 %v261, 80
    %v275 = vpop.permute.xlu0 %274
    %v278 = vmul.f32 %v257, %v273
    %v279 = vmul.f32 %v259, %v275
    %282 = vrot.lane.b32.xlu0 %v278, 16
    %v283 = vpop.permute.xlu0 %282
    %284 = vrot.lane.b32.xlu0 %v279, 16
    %v285 = vpop.permute.xlu0 %284
    %v288 = vadd.f32 %v268, %v283
    %v289 = vadd.f32 %v269, %v285
    %v290 = vtanh.pop %v288
    %v291 = vtanh.pop %v289
    %294 = vrot.lane.b32.xlu0 %v290, 16
    %v295 = vpop.permute.xlu0 %294
    %296 = vrot.lane.b32.xlu0 %v291, 16
    %v297 = vpop.permute.xlu0 %296
    %v300 = vmul.f32 %v257, %v295
    %v301 = vmul.f32 %v259, %v297
    %v302 = vpack.c.bf16 %v300, %v300
    %v303 = vpack.c.bf16 %v301, %v301
    %v306 = vunpack.c.l.b16 %v302
    %v307 = vunpack.c.l.b16 %v303
    %v308 = vrot.slane %v306, 1
    %v309 = vsel %vm194, %v307, %v308
    %v310 = vpack.c.b16 %v309, %v309
    %311 = vrot.lane.b32.xlu0 %v310, 96
    %v312 = vpop.permute.xlu0 %311
    %v314 = vsel %vm89, %v312, 0
    %316 = vmatprep.subr.bf16.mxu0 0
    %317 = vmatpush1.bf16.msra.mxu0 0
    %318 = vmatprep.subr.bf16.mxu0 0
    %319 = vmatpush1.bf16.msra.mxu0 0
    %320 = vmatprep.subr.bf16.mxu0 0
    %321 = vmatpush1.bf16.msra.mxu0 0
    %322 = vmatprep.subr.bf16.mxu0 0
    %323 = vmatpush1.bf16.msra.mxu0 0
    %324 = vmatprep.subr.bf16.mxu0 0
    %325 = vmatpush1.bf16.msra.mxu0 0
    %326 = vmatprep.subr.bf16.mxu0 0
    %327 = vmatpush1.bf16.msra.mxu0 0
    %328 = vmatprep.subr.bf16.mxu0 0
    %329 = vmatpush1.bf16.msra.mxu0 0
    %330 = vmatprep.subr.bf16.mxu0 0
    %331 = vmatpush1.bf16.msra.mxu0 %v87
    %332 = vmatprep.subr.bf16.mxu0 0
    %333 = vmatpush2.bf16.msra.mxu0 0
    %334 = vmatprep.subr.bf16.mxu0 0
    %335 = vmatpush2.bf16.msra.mxu0 0
    %336 = vmatprep.subr.bf16.mxu0 0
    %337 = vmatpush2.bf16.msra.mxu0 0
    %338 = vmatprep.subr.bf16.mxu0 0
    %339 = vmatpush2.bf16.msra.mxu0 0
    %340 = vmatprep.subr.bf16.mxu0 0
    %341 = vmatpush2.bf16.msra.mxu0 0
    %342 = vmatprep.subr.bf16.mxu0 0
    %343 = vmatpush2.bf16.msra.mxu0 0
    %344 = vmatprep.subr.bf16.mxu0 0
    %345 = vmatpush2.bf16.msra.mxu0 0
    %346 = vmatprep.subr.bf16.mxu0 0
    %347 = vmatpush2.bf16.msra.mxu0 0
    %348 = vmatprep.mubr.bf16.mxu0 0
    %349 = vmatmul.mubr.bf16.gmra.mxu0 %v314
    %v350 = vpop.f32.mrf.mxu0
    %v351 = vadd.f32 0.0, %v350
    %v352 = vpop.f32.mrf.mxu0
    %v353 = vpop.f32.mrf.mxu0
    %v354 = vpop.f32.mrf.mxu0
    %355 = vdwg.mxu0
    %v357 = vrot.slane %v351, 6
    %v358 = vrot.slane %v351, 7
    %v361 = vadd.f32 %v77, %v357
    %v362 = vadd.f32 %v80, %v358
    %v363 = vxor.u32 %v361, 2147483648
    %v364 = vxor.u32 %v362, 2147483648
    %v365 = vmul.f32 %v363, 1.442695
    %v366 = vpow.pop %v365
    %v367 = vmul.f32 %v364, 1.442695
    %v368 = vpow.pop %v367
    %v369 = vadd.f32 %v366, 1.0
    %v370 = vadd.f32 %v368, 1.0
    %v371 = vrcp.pop %v369
    %v372 = vmul.f32 1.0, %v371
    %v373 = vrcp.pop %v370
    %v374 = vmul.f32 1.0, %v373
    %v375 = vtanh.pop %v361
    %v376 = vtanh.pop %v362
    %v379 = vrot.slane %v288, 7
    %v380 = vrot.slane %v289, 7
    %v383 = vmul.f32 %v372, %v379
    %v384 = vmul.f32 %v374, %v380
    %387 = vrot.lane.b32.xlu0 %v375, 80
    %v388 = vpop.permute.xlu0 %387
    %389 = vrot.lane.b32.xlu0 %v376, 80
    %v390 = vpop.permute.xlu0 %389
    %v393 = vmul.f32 %v372, %v388
    %v394 = vmul.f32 %v374, %v390
    %397 = vrot.lane.b32.xlu0 %v393, 16
    %v398 = vpop.permute.xlu0 %397
    %399 = vrot.lane.b32.xlu0 %v394, 16
    %v400 = vpop.permute.xlu0 %399
    %v403 = vadd.f32 %v383, %v398
    %v404 = vadd.f32 %v384, %v400
    %v405 = vtanh.pop %v403
    %v406 = vtanh.pop %v404
    %409 = vrot.lane.b32.xlu0 %v405, 16
    %v410 = vpop.permute.xlu0 %409
    %411 = vrot.lane.b32.xlu0 %v406, 16
    %v412 = vpop.permute.xlu0 %411
    %v415 = vmul.f32 %v372, %v410
    %v416 = vmul.f32 %v374, %v412
    %v417 = vpack.c.bf16 %v415, %v415
    %v418 = vpack.c.bf16 %v416, %v416
    %v421 = vunpack.c.l.b16 %v417
    %v422 = vunpack.c.l.b16 %v418
    %v423 = vrot.slane %v421, 2
    %v424 = vrot.slane %v422, 1
    %v425 = vsel %vm194, %v424, %v423
    %v426 = vpack.c.b16 %v425, %v425
    %427 = vrot.lane.b32.xlu0 %v426, 96
    %v428 = vpop.permute.xlu0 %427
    %v430 = vsel %vm89, %v428, 0
    %432 = vmatprep.subr.bf16.mxu0 0
    %433 = vmatpush1.bf16.msra.mxu0 0
    %434 = vmatprep.subr.bf16.mxu0 0
    %435 = vmatpush1.bf16.msra.mxu0 0
    %436 = vmatprep.subr.bf16.mxu0 0
    %437 = vmatpush1.bf16.msra.mxu0 0
    %438 = vmatprep.subr.bf16.mxu0 0
    %439 = vmatpush1.bf16.msra.mxu0 0
    %440 = vmatprep.subr.bf16.mxu0 0
    %441 = vmatpush1.bf16.msra.mxu0 0
    %442 = vmatprep.subr.bf16.mxu0 0
    %443 = vmatpush1.bf16.msra.mxu0 0
    %444 = vmatprep.subr.bf16.mxu0 0
    %445 = vmatpush1.bf16.msra.mxu0 0
    %446 = vmatprep.subr.bf16.mxu0 0
    %447 = vmatpush1.bf16.msra.mxu0 %v87
    %448 = vmatprep.subr.bf16.mxu0 0
    %449 = vmatpush2.bf16.msra.mxu0 0
    %450 = vmatprep.subr.bf16.mxu0 0
    %451 = vmatpush2.bf16.msra.mxu0 0
    %452 = vmatprep.subr.bf16.mxu0 0
    %453 = vmatpush2.bf16.msra.mxu0 0
    %454 = vmatprep.subr.bf16.mxu0 0
    %455 = vmatpush2.bf16.msra.mxu0 0
    %456 = vmatprep.subr.bf16.mxu0 0
    %457 = vmatpush2.bf16.msra.mxu0 0
    %458 = vmatprep.subr.bf16.mxu0 0
    %459 = vmatpush2.bf16.msra.mxu0 0
    %460 = vmatprep.subr.bf16.mxu0 0
    %461 = vmatpush2.bf16.msra.mxu0 0
    %462 = vmatprep.subr.bf16.mxu0 0
    %463 = vmatpush2.bf16.msra.mxu0 0
    %464 = vmatprep.mubr.bf16.mxu0 0
    %465 = vmatmul.mubr.bf16.gmra.mxu0 %v430
    %v466 = vpop.f32.mrf.mxu0
    %v467 = vadd.f32 0.0, %v466
    %v468 = vpop.f32.mrf.mxu0
    %v469 = vpop.f32.mrf.mxu0
    %v470 = vpop.f32.mrf.mxu0
    %471 = vdwg.mxu0
    %v473 = vrot.slane %v467, 5
    %v474 = vrot.slane %v467, 6
    %v477 = vadd.f32 %v77, %v473
    %v478 = vadd.f32 %v80, %v474
    %v479 = vxor.u32 %v477, 2147483648
    %v480 = vxor.u32 %v478, 2147483648
    %v481 = vmul.f32 %v479, 1.442695
    %v482 = vpow.pop %v481
    %v483 = vmul.f32 %v480, 1.442695
    %v484 = vpow.pop %v483
    %v485 = vadd.f32 %v482, 1.0
    %v486 = vadd.f32 %v484, 1.0
    %v487 = vrcp.pop %v485
    %v488 = vmul.f32 1.0, %v487
    %v489 = vrcp.pop %v486
    %v490 = vmul.f32 1.0, %v489
    %v491 = vtanh.pop %v477
    %v492 = vtanh.pop %v478
    %v495 = vrot.slane %v403, 7
    %v496 = vrot.slane %v404, 7
    %v499 = vmul.f32 %v488, %v495
    %v500 = vmul.f32 %v490, %v496
    %503 = vrot.lane.b32.xlu0 %v491, 80
    %v504 = vpop.permute.xlu0 %503
    %505 = vrot.lane.b32.xlu0 %v492, 80
    %v506 = vpop.permute.xlu0 %505
    %v509 = vmul.f32 %v488, %v504
    %v510 = vmul.f32 %v490, %v506
    %513 = vrot.lane.b32.xlu0 %v509, 16
    %v514 = vpop.permute.xlu0 %513
    %515 = vrot.lane.b32.xlu0 %v510, 16
    %v516 = vpop.permute.xlu0 %515
    %v519 = vadd.f32 %v499, %v514
    %v520 = vadd.f32 %v500, %v516
    %v521 = vtanh.pop %v519
    %v522 = vtanh.pop %v520
    %525 = vrot.lane.b32.xlu0 %v521, 16
    %v526 = vpop.permute.xlu0 %525
    %527 = vrot.lane.b32.xlu0 %v522, 16
    %v528 = vpop.permute.xlu0 %527
    %v531 = vmul.f32 %v488, %v526
    %v532 = vmul.f32 %v490, %v528
    %v533 = vpack.c.bf16 %v531, %v531
    %v534 = vpack.c.bf16 %v532, %v532
    %v537 = vunpack.c.l.b16 %v533
    %v538 = vunpack.c.l.b16 %v534
    %v539 = vrot.slane %v537, 3
    %v540 = vrot.slane %v538, 2
    %v541 = vsel %vm194, %v540, %v539
    %v542 = vpack.c.b16 %v541, %v541
    %543 = vrot.lane.b32.xlu0 %v542, 96
    %v544 = vpop.permute.xlu0 %543
    %v546 = vsel %vm89, %v544, 0
    %548 = vmatprep.subr.bf16.mxu0 0
    %549 = vmatpush1.bf16.msra.mxu0 0
    %550 = vmatprep.subr.bf16.mxu0 0
    %551 = vmatpush1.bf16.msra.mxu0 0
    %552 = vmatprep.subr.bf16.mxu0 0
    %553 = vmatpush1.bf16.msra.mxu0 0
    %554 = vmatprep.subr.bf16.mxu0 0
    %555 = vmatpush1.bf16.msra.mxu0 0
    %556 = vmatprep.subr.bf16.mxu0 0
    %557 = vmatpush1.bf16.msra.mxu0 0
    %558 = vmatprep.subr.bf16.mxu0 0
    %559 = vmatpush1.bf16.msra.mxu0 0
    %560 = vmatprep.subr.bf16.mxu0 0
    %561 = vmatpush1.bf16.msra.mxu0 0
    %562 = vmatprep.subr.bf16.mxu0 0
    %563 = vmatpush1.bf16.msra.mxu0 %v87
    %564 = vmatprep.subr.bf16.mxu0 0
    %565 = vmatpush2.bf16.msra.mxu0 0
    %566 = vmatprep.subr.bf16.mxu0 0
    %567 = vmatpush2.bf16.msra.mxu0 0
    %568 = vmatprep.subr.bf16.mxu0 0
    %569 = vmatpush2.bf16.msra.mxu0 0
    %570 = vmatprep.subr.bf16.mxu0 0
    %571 = vmatpush2.bf16.msra.mxu0 0
    %572 = vmatprep.subr.bf16.mxu0 0
    %573 = vmatpush2.bf16.msra.mxu0 0
    %574 = vmatprep.subr.bf16.mxu0 0
    %575 = vmatpush2.bf16.msra.mxu0 0
    %576 = vmatprep.subr.bf16.mxu0 0
    %577 = vmatpush2.bf16.msra.mxu0 0
    %578 = vmatprep.subr.bf16.mxu0 0
    %579 = vmatpush2.bf16.msra.mxu0 0
    %580 = vmatprep.mubr.bf16.mxu0 0
    %581 = vmatmul.mubr.bf16.gmra.mxu0 %v546
    %v582 = vpop.f32.mrf.mxu0
    %v583 = vadd.f32 0.0, %v582
    %v584 = vpop.f32.mrf.mxu0
    %v585 = vpop.f32.mrf.mxu0
    %v586 = vpop.f32.mrf.mxu0
    %587 = vdwg.mxu0
    %v589 = vrot.slane %v583, 4
    %v590 = vrot.slane %v583, 5
    %v593 = vadd.f32 %v77, %v589
    %v594 = vadd.f32 %v80, %v590
    %v595 = vxor.u32 %v593, 2147483648
    %v596 = vxor.u32 %v594, 2147483648
    %v597 = vmul.f32 %v595, 1.442695
    %v598 = vpow.pop %v597
    %v599 = vmul.f32 %v596, 1.442695
    %v600 = vpow.pop %v599
    %v601 = vadd.f32 %v598, 1.0
    %v602 = vadd.f32 %v600, 1.0
    %v603 = vrcp.pop %v601
    %v604 = vmul.f32 1.0, %v603
    %v605 = vrcp.pop %v602
    %v606 = vmul.f32 1.0, %v605
    %v607 = vtanh.pop %v593
    %v608 = vtanh.pop %v594
    %v611 = vrot.slane %v519, 7
    %v612 = vrot.slane %v520, 7
    %v615 = vmul.f32 %v604, %v611
    %v616 = vmul.f32 %v606, %v612
    %619 = vrot.lane.b32.xlu0 %v607, 80
    %v620 = vpop.permute.xlu0 %619
    %621 = vrot.lane.b32.xlu0 %v608, 80
    %v622 = vpop.permute.xlu0 %621
    %v625 = vmul.f32 %v604, %v620
    %v626 = vmul.f32 %v606, %v622
    %629 = vrot.lane.b32.xlu0 %v625, 16
    %v630 = vpop.permute.xlu0 %629
    %631 = vrot.lane.b32.xlu0 %v626, 16
    %v632 = vpop.permute.xlu0 %631
    %v635 = vadd.f32 %v615, %v630
    %v636 = vadd.f32 %v616, %v632
    %v637 = vtanh.pop %v635
    %v638 = vtanh.pop %v636
    %641 = vrot.lane.b32.xlu0 %v637, 16
    %v642 = vpop.permute.xlu0 %641
    %643 = vrot.lane.b32.xlu0 %v638, 16
    %v644 = vpop.permute.xlu0 %643
    %v647 = vmul.f32 %v604, %v642
    %v648 = vmul.f32 %v606, %v644
    %v649 = vpack.c.bf16 %v647, %v647
    %v650 = vpack.c.bf16 %v648, %v648
    %v653 = vunpack.c.l.b16 %v649
    %v654 = vunpack.c.l.b16 %v650
    %v655 = vrot.slane %v653, 4
    %v656 = vrot.slane %v654, 3
    %v657 = vsel %vm194, %v656, %v655
    %v658 = vpack.c.b16 %v657, %v657
    %659 = vrot.lane.b32.xlu0 %v658, 96
    %v660 = vpop.permute.xlu0 %659
    %v662 = vsel %vm89, %v660, 0
    %664 = vmatprep.subr.bf16.mxu0 0
    %665 = vmatpush1.bf16.msra.mxu0 0
    %666 = vmatprep.subr.bf16.mxu0 0
    %667 = vmatpush1.bf16.msra.mxu0 0
    %668 = vmatprep.subr.bf16.mxu0 0
    %669 = vmatpush1.bf16.msra.mxu0 0
    %670 = vmatprep.subr.bf16.mxu0 0
    %671 = vmatpush1.bf16.msra.mxu0 0
    %672 = vmatprep.subr.bf16.mxu0 0
    %673 = vmatpush1.bf16.msra.mxu0 0
    %674 = vmatprep.subr.bf16.mxu0 0
    %675 = vmatpush1.bf16.msra.mxu0 0
    %676 = vmatprep.subr.bf16.mxu0 0
    %677 = vmatpush1.bf16.msra.mxu0 0
    %678 = vmatprep.subr.bf16.mxu0 0
    %679 = vmatpush1.bf16.msra.mxu0 %v87
    %680 = vmatprep.subr.bf16.mxu0 0
    %681 = vmatpush2.bf16.msra.mxu0 0
    %682 = vmatprep.subr.bf16.mxu0 0
    %683 = vmatpush2.bf16.msra.mxu0 0
    %684 = vmatprep.subr.bf16.mxu0 0
    %685 = vmatpush2.bf16.msra.mxu0 0
    %686 = vmatprep.subr.bf16.mxu0 0
    %687 = vmatpush2.bf16.msra.mxu0 0
    %688 = vmatprep.subr.bf16.mxu0 0
    %689 = vmatpush2.bf16.msra.mxu0 0
    %690 = vmatprep.subr.bf16.mxu0 0
    %691 = vmatpush2.bf16.msra.mxu0 0
    %692 = vmatprep.subr.bf16.mxu0 0
    %693 = vmatpush2.bf16.msra.mxu0 0
    %694 = vmatprep.subr.bf16.mxu0 0
    %695 = vmatpush2.bf16.msra.mxu0 0
    %696 = vmatprep.mubr.bf16.mxu0 0
    %697 = vmatmul.mubr.bf16.gmra.mxu0 %v662
    %v698 = vpop.f32.mrf.mxu0
    %v699 = vadd.f32 0.0, %v698
    %v700 = vpop.f32.mrf.mxu0
    %v701 = vpop.f32.mrf.mxu0
    %v702 = vpop.f32.mrf.mxu0
    %703 = vdwg.mxu0
    %v705 = vrot.slane %v699, 3
    %v706 = vrot.slane %v699, 4
    %v709 = vadd.f32 %v77, %v705
    %v710 = vadd.f32 %v80, %v706
    %v711 = vxor.u32 %v709, 2147483648
    %v712 = vxor.u32 %v710, 2147483648
    %v713 = vmul.f32 %v711, 1.442695
    %v714 = vpow.pop %v713
    %v715 = vmul.f32 %v712, 1.442695
    %v716 = vpow.pop %v715
    %v717 = vadd.f32 %v714, 1.0
    %v718 = vadd.f32 %v716, 1.0
    %v719 = vrcp.pop %v717
    %v720 = vmul.f32 1.0, %v719
    %v721 = vrcp.pop %v718
    %v722 = vmul.f32 1.0, %v721
    %v723 = vtanh.pop %v709
    %v724 = vtanh.pop %v710
    %v727 = vrot.slane %v635, 7
    %v728 = vrot.slane %v636, 7
    %v731 = vmul.f32 %v720, %v727
    %v732 = vmul.f32 %v722, %v728
    %735 = vrot.lane.b32.xlu0 %v723, 80
    %v736 = vpop.permute.xlu0 %735
    %737 = vrot.lane.b32.xlu0 %v724, 80
    %v738 = vpop.permute.xlu0 %737
    %v741 = vmul.f32 %v720, %v736
    %v742 = vmul.f32 %v722, %v738
    %745 = vrot.lane.b32.xlu0 %v741, 16
    %v746 = vpop.permute.xlu0 %745
    %747 = vrot.lane.b32.xlu0 %v742, 16
    %v748 = vpop.permute.xlu0 %747
    %v751 = vadd.f32 %v731, %v746
    %v752 = vadd.f32 %v732, %v748
    %v753 = vtanh.pop %v751
    %v754 = vtanh.pop %v752
    %757 = vrot.lane.b32.xlu0 %v753, 16
    %v758 = vpop.permute.xlu0 %757
    %759 = vrot.lane.b32.xlu0 %v754, 16
    %v760 = vpop.permute.xlu0 %759
    %v763 = vmul.f32 %v720, %v758
    %v764 = vmul.f32 %v722, %v760
    %v765 = vpack.c.bf16 %v763, %v763
    %v766 = vpack.c.bf16 %v764, %v764
    %v769 = vunpack.c.l.b16 %v765
    %v770 = vunpack.c.l.b16 %v766
    %v771 = vrot.slane %v769, 5
    %v772 = vrot.slane %v770, 4
    %v773 = vsel %vm194, %v772, %v771
    %v774 = vpack.c.b16 %v773, %v773
    %775 = vrot.lane.b32.xlu0 %v774, 96
    %v776 = vpop.permute.xlu0 %775
    %v778 = vsel %vm89, %v776, 0
    %780 = vmatprep.subr.bf16.mxu0 0
    %781 = vmatpush1.bf16.msra.mxu0 0
    %782 = vmatprep.subr.bf16.mxu0 0
    %783 = vmatpush1.bf16.msra.mxu0 0
    %784 = vmatprep.subr.bf16.mxu0 0
    %785 = vmatpush1.bf16.msra.mxu0 0
    %786 = vmatprep.subr.bf16.mxu0 0
    %787 = vmatpush1.bf16.msra.mxu0 0
    %788 = vmatprep.subr.bf16.mxu0 0
    %789 = vmatpush1.bf16.msra.mxu0 0
    %790 = vmatprep.subr.bf16.mxu0 0
    %791 = vmatpush1.bf16.msra.mxu0 0
    %792 = vmatprep.subr.bf16.mxu0 0
    %793 = vmatpush1.bf16.msra.mxu0 0
    %794 = vmatprep.subr.bf16.mxu0 0
    %795 = vmatpush1.bf16.msra.mxu0 %v87
    %796 = vmatprep.subr.bf16.mxu0 0
    %797 = vmatpush2.bf16.msra.mxu0 0
    %798 = vmatprep.subr.bf16.mxu0 0
    %799 = vmatpush2.bf16.msra.mxu0 0
    %800 = vmatprep.subr.bf16.mxu0 0
    %801 = vmatpush2.bf16.msra.mxu0 0
    %802 = vmatprep.subr.bf16.mxu0 0
    %803 = vmatpush2.bf16.msra.mxu0 0
    %804 = vmatprep.subr.bf16.mxu0 0
    %805 = vmatpush2.bf16.msra.mxu0 0
    %806 = vmatprep.subr.bf16.mxu0 0
    %807 = vmatpush2.bf16.msra.mxu0 0
    %808 = vmatprep.subr.bf16.mxu0 0
    %809 = vmatpush2.bf16.msra.mxu0 0
    %810 = vmatprep.subr.bf16.mxu0 0
    %811 = vmatpush2.bf16.msra.mxu0 0
    %812 = vmatprep.mubr.bf16.mxu0 0
    %813 = vmatmul.mubr.bf16.gmra.mxu0 %v778
    %v814 = vpop.f32.mrf.mxu0
    %v815 = vadd.f32 0.0, %v814
    %v816 = vpop.f32.mrf.mxu0
    %v817 = vpop.f32.mrf.mxu0
    %v818 = vpop.f32.mrf.mxu0
    %819 = vdwg.mxu0
    %v821 = vrot.slane %v815, 2
    %v822 = vrot.slane %v815, 3
    %v825 = vadd.f32 %v77, %v821
    %v826 = vadd.f32 %v80, %v822
    %v827 = vxor.u32 %v825, 2147483648
    %v828 = vxor.u32 %v826, 2147483648
    %v829 = vmul.f32 %v827, 1.442695
    %v830 = vpow.pop %v829
    %v831 = vmul.f32 %v828, 1.442695
    %v832 = vpow.pop %v831
    %v833 = vadd.f32 %v830, 1.0
    %v834 = vadd.f32 %v832, 1.0
    %v835 = vrcp.pop %v833
    %v836 = vmul.f32 1.0, %v835
    %v837 = vrcp.pop %v834
    %v838 = vmul.f32 1.0, %v837
    %v839 = vtanh.pop %v825
    %v840 = vtanh.pop %v826
    %v843 = vrot.slane %v751, 7
    %v844 = vrot.slane %v752, 7
    %v847 = vmul.f32 %v836, %v843
    %v848 = vmul.f32 %v838, %v844
    %851 = vrot.lane.b32.xlu0 %v839, 80
    %v852 = vpop.permute.xlu0 %851
    %853 = vrot.lane.b32.xlu0 %v840, 80
    %v854 = vpop.permute.xlu0 %853
    %v857 = vmul.f32 %v836, %v852
    %v858 = vmul.f32 %v838, %v854
    %861 = vrot.lane.b32.xlu0 %v857, 16
    %v862 = vpop.permute.xlu0 %861
    %863 = vrot.lane.b32.xlu0 %v858, 16
    %v864 = vpop.permute.xlu0 %863
    %v867 = vadd.f32 %v847, %v862
    %v868 = vadd.f32 %v848, %v864
    %v869 = vtanh.pop %v867
    %v870 = vtanh.pop %v868
    %873 = vrot.lane.b32.xlu0 %v869, 16
    %v874 = vpop.permute.xlu0 %873
    %875 = vrot.lane.b32.xlu0 %v870, 16
    %v876 = vpop.permute.xlu0 %875
    %v879 = vmul.f32 %v836, %v874
    %v880 = vmul.f32 %v838, %v876
    %v881 = vpack.c.bf16 %v879, %v879
    %v882 = vpack.c.bf16 %v880, %v880
    %v885 = vunpack.c.l.b16 %v881
    %v886 = vunpack.c.l.b16 %v882
    %v887 = vrot.slane %v885, 6
    %v888 = vrot.slane %v886, 5
    %v889 = vsel %vm194, %v888, %v887
    %v890 = vpack.c.b16 %v889, %v889
    %891 = vrot.lane.b32.xlu0 %v890, 96
    %v892 = vpop.permute.xlu0 %891
    %v894 = vsel %vm89, %v892, 0
    %896 = vmatprep.subr.bf16.mxu0 0
    %897 = vmatpush1.bf16.msra.mxu0 0
    %898 = vmatprep.subr.bf16.mxu0 0
    %899 = vmatpush1.bf16.msra.mxu0 0
    %900 = vmatprep.subr.bf16.mxu0 0
    %901 = vmatpush1.bf16.msra.mxu0 0
    %902 = vmatprep.subr.bf16.mxu0 0
    %903 = vmatpush1.bf16.msra.mxu0 0
    %904 = vmatprep.subr.bf16.mxu0 0
    %905 = vmatpush1.bf16.msra.mxu0 0
    %906 = vmatprep.subr.bf16.mxu0 0
    %907 = vmatpush1.bf16.msra.mxu0 0
    %908 = vmatprep.subr.bf16.mxu0 0
    %909 = vmatpush1.bf16.msra.mxu0 0
    %910 = vmatprep.subr.bf16.mxu0 0
    %911 = vmatpush1.bf16.msra.mxu0 %v87
    %912 = vmatprep.subr.bf16.mxu0 0
    %913 = vmatpush2.bf16.msra.mxu0 0
    %914 = vmatprep.subr.bf16.mxu0 0
    %915 = vmatpush2.bf16.msra.mxu0 0
    %916 = vmatprep.subr.bf16.mxu0 0
    %917 = vmatpush2.bf16.msra.mxu0 0
    %918 = vmatprep.subr.bf16.mxu0 0
    %919 = vmatpush2.bf16.msra.mxu0 0
    %920 = vmatprep.subr.bf16.mxu0 0
    %921 = vmatpush2.bf16.msra.mxu0 0
    %922 = vmatprep.subr.bf16.mxu0 0
    %923 = vmatpush2.bf16.msra.mxu0 0
    %924 = vmatprep.subr.bf16.mxu0 0
    %925 = vmatpush2.bf16.msra.mxu0 0
    %926 = vmatprep.subr.bf16.mxu0 0
    %927 = vmatpush2.bf16.msra.mxu0 0
    %928 = vmatprep.mubr.bf16.mxu0 0
    %929 = vmatmul.mubr.bf16.gmra.mxu0 %v894
    %v930 = vpop.f32.mrf.mxu0
    %v931 = vadd.f32 0.0, %v930
    %v932 = vpop.f32.mrf.mxu0
    %v933 = vpop.f32.mrf.mxu0
    %v934 = vpop.f32.mrf.mxu0
    %935 = vdwg.mxu0
    %v937 = vrot.slane %v931, 1
    %v938 = vrot.slane %v931, 2
    %v941 = vadd.f32 %v77, %v937
    %v942 = vadd.f32 %v80, %v938
    %v943 = vxor.u32 %v941, 2147483648
    %v944 = vxor.u32 %v942, 2147483648
    %v945 = vmul.f32 %v943, 1.442695
    %v946 = vpow.pop %v945
    %v947 = vmul.f32 %v944, 1.442695
    %v948 = vpow.pop %v947
    %v949 = vadd.f32 %v946, 1.0
    %v950 = vadd.f32 %v948, 1.0
    %v951 = vrcp.pop %v949
    %v952 = vmul.f32 1.0, %v951
    %v953 = vrcp.pop %v950
    %v954 = vmul.f32 1.0, %v953
    %v955 = vtanh.pop %v941
    %v956 = vtanh.pop %v942
    %v959 = vrot.slane %v867, 7
    %v960 = vrot.slane %v868, 7
    %v963 = vmul.f32 %v952, %v959
    %v964 = vmul.f32 %v954, %v960
    %967 = vrot.lane.b32.xlu0 %v955, 80
    %v968 = vpop.permute.xlu0 %967
    %969 = vrot.lane.b32.xlu0 %v956, 80
    %v970 = vpop.permute.xlu0 %969
    %v973 = vmul.f32 %v952, %v968
    %v974 = vmul.f32 %v954, %v970
    %977 = vrot.lane.b32.xlu0 %v973, 16
    %v978 = vpop.permute.xlu0 %977
    %979 = vrot.lane.b32.xlu0 %v974, 16
    %v980 = vpop.permute.xlu0 %979
    %v983 = vadd.f32 %v963, %v978
    %v984 = vadd.f32 %v964, %v980
    %v985 = vtanh.pop %v983
    %v986 = vtanh.pop %v984
    %989 = vrot.lane.b32.xlu0 %v985, 16
    %v990 = vpop.permute.xlu0 %989
    %991 = vrot.lane.b32.xlu0 %v986, 16
    %v992 = vpop.permute.xlu0 %991
    %v995 = vmul.f32 %v952, %v990
    %v996 = vmul.f32 %v954, %v992
    %v997 = vpack.c.bf16 %v995, %v995
    %v998 = vpack.c.bf16 %v996, %v996
    %v999 = vlaneseq
    %v1000 = vshrl.u32 %v999, 7
    %v1001 = vsub.s32 0, %v1000
    %v1002 = vrot.slane %v24, %v1001
    %v1005 = vunpack.c.l.b16 %v997
    %v1006 = vunpack.c.l.b16 %v998
    %v1007 = vrot.slane %v1005, 7
    %v1008 = vrot.slane %v1006, 6
    %v1009 = vsel %vm194, %v1008, %v1007
    %v1010 = vpack.c.b16 %v1009, %v1009
    %1011 = vrot.lane.b32.xlu0 %v1010, 96
    %v1012 = vpop.permute.xlu0 %1011
    %v1015 = vunpack.c.l.b16 %v16
    %v1016 = vunpack.c.l.b16 %v17
    %v1017 = vpack.c.b16 %v1016, %v1015
    %v1020 = vsel %vm89, %v1012, 0
    %1022 = vmatprep.subr.bf16.mxu0 0
    %1023 = vmatpush1.bf16.msra.mxu0 0
    %1024 = vmatprep.subr.bf16.mxu0 0
    %1025 = vmatpush1.bf16.msra.mxu0 0
    %1026 = vmatprep.subr.bf16.mxu0 0
    %1027 = vmatpush1.bf16.msra.mxu0 0
    %1028 = vmatprep.subr.bf16.mxu0 0
    %1029 = vmatpush1.bf16.msra.mxu0 0
    %1030 = vmatprep.subr.bf16.mxu0 0
    %1031 = vmatpush1.bf16.msra.mxu0 0
    %1032 = vmatprep.subr.bf16.mxu0 0
    %1033 = vmatpush1.bf16.msra.mxu0 0
    %1034 = vmatprep.subr.bf16.mxu0 0
    %1035 = vmatpush1.bf16.msra.mxu0 0
    %1036 = vmatprep.subr.bf16.mxu0 0
    %1037 = vmatpush1.bf16.msra.mxu0 %v1017
    %1038 = vmatprep.subr.bf16.mxu0 0
    %1039 = vmatpush2.bf16.msra.mxu0 0
    %1040 = vmatprep.subr.bf16.mxu0 0
    %1041 = vmatpush2.bf16.msra.mxu0 0
    %1042 = vmatprep.subr.bf16.mxu0 0
    %1043 = vmatpush2.bf16.msra.mxu0 0
    %1044 = vmatprep.subr.bf16.mxu0 0
    %1045 = vmatpush2.bf16.msra.mxu0 0
    %1046 = vmatprep.subr.bf16.mxu0 0
    %1047 = vmatpush2.bf16.msra.mxu0 0
    %1048 = vmatprep.subr.bf16.mxu0 0
    %1049 = vmatpush2.bf16.msra.mxu0 0
    %1050 = vmatprep.subr.bf16.mxu0 0
    %1051 = vmatpush2.bf16.msra.mxu0 0
    %1052 = vmatprep.subr.bf16.mxu0 0
    %1053 = vmatpush2.bf16.msra.mxu0 0
    %1054 = vmatprep.mubr.bf16.mxu0 0
    %1055 = vmatmul.mubr.bf16.gmra.mxu0 %v1020
    %v1056 = vpop.f32.mrf.mxu0
    %v1057 = vadd.f32 %v1002, %v1056
    %v1058 = vpop.f32.mrf.mxu0
    %v1059 = vpop.f32.mrf.mxu0
    %v1060 = vpop.f32.mrf.mxu0
    %1061 = vdwg.mxu0
    %v1062 = vpack.c.bf16 %v1057, %v1057
    %v1063 = vlaneseq
    %v1064 = vshrl.u32 %v1063, 7
    %v1065 = vsub.s32 0, %v1064
    %v1066 = vrot.slane %v26, %v1065
    %v1069 = vunpack.c.l.b16 %v18
    %v1070 = vunpack.c.l.b16 %v19
    %v1071 = vpack.c.b16 %v1070, %v1069
    %v1074 = vsel %vm89, %v1062, 0
    %1076 = vmatprep.subr.bf16.mxu0 0
    %1077 = vmatpush1.bf16.msra.mxu0 0
    %1078 = vmatprep.subr.bf16.mxu0 0
    %1079 = vmatpush1.bf16.msra.mxu0 0
    %1080 = vmatprep.subr.bf16.mxu0 0
    %1081 = vmatpush1.bf16.msra.mxu0 0
    %1082 = vmatprep.subr.bf16.mxu0 0
    %1083 = vmatpush1.bf16.msra.mxu0 0
    %1084 = vmatprep.subr.bf16.mxu0 0
    %1085 = vmatpush1.bf16.msra.mxu0 0
    %1086 = vmatprep.subr.bf16.mxu0 0
    %1087 = vmatpush1.bf16.msra.mxu0 0
    %1088 = vmatprep.subr.bf16.mxu0 0
    %1089 = vmatpush1.bf16.msra.mxu0 0
    %1090 = vmatprep.subr.bf16.mxu0 0
    %1091 = vmatpush1.bf16.msra.mxu0 %v1071
    %1092 = vmatprep.subr.bf16.mxu0 0
    %1093 = vmatpush2.bf16.msra.mxu0 0
    %1094 = vmatprep.subr.bf16.mxu0 0
    %1095 = vmatpush2.bf16.msra.mxu0 0
    %1096 = vmatprep.subr.bf16.mxu0 0
    %1097 = vmatpush2.bf16.msra.mxu0 0
    %1098 = vmatprep.subr.bf16.mxu0 0
    %1099 = vmatpush2.bf16.msra.mxu0 0
    %1100 = vmatprep.subr.bf16.mxu0 0
    %1101 = vmatpush2.bf16.msra.mxu0 0
    %1102 = vmatprep.subr.bf16.mxu0 0
    %1103 = vmatpush2.bf16.msra.mxu0 0
    %1104 = vmatprep.subr.bf16.mxu0 0
    %1105 = vmatpush2.bf16.msra.mxu0 0
    %1106 = vmatprep.subr.bf16.mxu0 0
    %1107 = vmatpush2.bf16.msra.mxu0 0
    %1108 = vmatprep.mubr.bf16.mxu0 0
    %1109 = vmatmul.mubr.bf16.gmra.mxu0 %v1074
    %v1110 = vpop.f32.mrf.mxu0
    %v1111 = vadd.f32 %v1066, %v1110
    %v1112 = vpop.f32.mrf.mxu0
    %v1113 = vpop.f32.mrf.mxu0
    %v1114 = vpop.f32.mrf.mxu0
    %1115 = vdwg.mxu0
    %v1116 = vsel %vm34, 0, 0
    %v1119 = vsel %vm38, %v20, 0
    %1121 = vmatprep.subr.bf16.mxu0 0
    %1122 = vmatpush1.bf16.msra.mxu0 0
    %1123 = vmatprep.subr.bf16.mxu0 0
    %1124 = vmatpush1.bf16.msra.mxu0 0
    %1125 = vmatprep.subr.bf16.mxu0 0
    %1126 = vmatpush1.bf16.msra.mxu0 0
    %1127 = vmatprep.subr.bf16.mxu0 0
    %1128 = vmatpush1.bf16.msra.mxu0 0
    %1129 = vmatprep.subr.bf16.mxu0 0
    %1130 = vmatpush1.bf16.msra.mxu0 0
    %1131 = vmatprep.subr.bf16.mxu0 0
    %1132 = vmatpush1.bf16.msra.mxu0 0
    %1133 = vmatprep.subr.bf16.mxu0 0
    %1134 = vmatpush1.bf16.msra.mxu0 0
    %1135 = vmatprep.subr.bf16.mxu0 0
    %1136 = vmatpush1.bf16.msra.mxu0 %v1119
    %1137 = vmatprep.subr.bf16.mxu0 0
    %1138 = vmatpush2.bf16.msra.mxu0 0
    %1139 = vmatprep.subr.bf16.mxu0 0
    %1140 = vmatpush2.bf16.msra.mxu0 0
    %1141 = vmatprep.subr.bf16.mxu0 0
    %1142 = vmatpush2.bf16.msra.mxu0 0
    %1143 = vmatprep.subr.bf16.mxu0 0
    %1144 = vmatpush2.bf16.msra.mxu0 0
    %1145 = vmatprep.subr.bf16.mxu0 0
    %1146 = vmatpush2.bf16.msra.mxu0 0
    %1147 = vmatprep.subr.bf16.mxu0 0
    %1148 = vmatpush2.bf16.msra.mxu0 0
    %1149 = vmatprep.subr.bf16.mxu0 0
    %1150 = vmatpush2.bf16.msra.mxu0 0
    %1151 = vmatprep.subr.bf16.mxu0 0
    %1152 = vmatpush2.bf16.msra.mxu0 0
    %1153 = vmatprep.mubr.bf16.mxu0 0
    %1154 = vmatmul.mubr.bf16.gmra.mxu0 %v1116
    %v1155 = vpop.f32.mrf.mxu0
    %v1156 = vadd.f32 0.0, %v1155
    %v1157 = vpop.f32.mrf.mxu0
    %v1158 = vpop.f32.mrf.mxu0
    %v1159 = vpop.f32.mrf.mxu0
    %1160 = vdwg.mxu0
    %v1161 = vadd.f32 %v1111, %v1156
    %v1162 = vxor.u32 %v1161, 2147483648
    %v1163 = vmul.f32 %v1162, 1.442695
    %v1164 = vpow.pop %v1163
    %v1165 = vadd.f32 %v1164, 1.0
    %v1166 = vrcp.pop %v1165
    %v1167 = vmul.f32 1.0, %v1166
    %v1168 = vtanh.pop %v1161
    %v1169 = vmul.f32 %v1167, 0.0
    %1171 = vrot.lane.b32.xlu0 %v1168, 104
    %v1172 = vpop.permute.xlu0 %1171
    %v1174 = vmul.f32 %v1167, %v1172
    %1176 = vrot.lane.b32.xlu0 %v1174, 8
    %v1177 = vpop.permute.xlu0 %1176
    %v1179 = vadd.f32 %v1169, %v1177
    %v1180 = vtanh.pop %v1179
    %1182 = vrot.lane.b32.xlu0 %v1180, 8
    %v1183 = vpop.permute.xlu0 %1182
    %v1185 = vmul.f32 %v1167, %v1183
    %v1186 = vpack.c.bf16 %v1185, %v1185
    %1188 = vrot.lane.b32.xlu0 %v1186, 112
    %v1189 = vpop.permute.xlu0 %1188
    %v1191 = vsel %vm34, %v1189, 0
    %1193 = vmatprep.subr.bf16.mxu0 0
    %1194 = vmatpush1.bf16.msra.mxu0 0
    %1195 = vmatprep.subr.bf16.mxu0 0
    %1196 = vmatpush1.bf16.msra.mxu0 0
    %1197 = vmatprep.subr.bf16.mxu0 0
    %1198 = vmatpush1.bf16.msra.mxu0 0
    %1199 = vmatprep.subr.bf16.mxu0 0
    %1200 = vmatpush1.bf16.msra.mxu0 0
    %1201 = vmatprep.subr.bf16.mxu0 0
    %1202 = vmatpush1.bf16.msra.mxu0 0
    %1203 = vmatprep.subr.bf16.mxu0 0
    %1204 = vmatpush1.bf16.msra.mxu0 0
    %1205 = vmatprep.subr.bf16.mxu0 0
    %1206 = vmatpush1.bf16.msra.mxu0 0
    %1207 = vmatprep.subr.bf16.mxu0 0
    %1208 = vmatpush1.bf16.msra.mxu0 %v1119
    %1209 = vmatprep.subr.bf16.mxu0 0
    %1210 = vmatpush2.bf16.msra.mxu0 0
    %1211 = vmatprep.subr.bf16.mxu0 0
    %1212 = vmatpush2.bf16.msra.mxu0 0
    %1213 = vmatprep.subr.bf16.mxu0 0
    %1214 = vmatpush2.bf16.msra.mxu0 0
    %1215 = vmatprep.subr.bf16.mxu0 0
    %1216 = vmatpush2.bf16.msra.mxu0 0
    %1217 = vmatprep.subr.bf16.mxu0 0
    %1218 = vmatpush2.bf16.msra.mxu0 0
    %1219 = vmatprep.subr.bf16.mxu0 0
    %1220 = vmatpush2.bf16.msra.mxu0 0
    %1221 = vmatprep.subr.bf16.mxu0 0
    %1222 = vmatpush2.bf16.msra.mxu0 0
    %1223 = vmatprep.subr.bf16.mxu0 0
    %1224 = vmatpush2.bf16.msra.mxu0 0
    %1225 = vmatprep.mubr.bf16.mxu0 0
    %1226 = vmatmul.mubr.bf16.gmra.mxu0 %v1191
    %v1227 = vpop.f32.mrf.mxu0
    %v1228 = vadd.f32 0.0, %v1227
    %v1229 = vpop.f32.mrf.mxu0
    %v1230 = vpop.f32.mrf.mxu0
    %v1231 = vpop.f32.mrf.mxu0
    %1232 = vdwg.mxu0
    %v1233 = vadd.f32 %v1111, %v1228
    %v1234 = vxor.u32 %v1233, 2147483648
    %v1235 = vmul.f32 %v1234, 1.442695
    %v1236 = vpow.pop %v1235
    %v1237 = vadd.f32 %v1236, 1.0
    %v1238 = vrcp.pop %v1237
    %v1239 = vmul.f32 1.0, %v1238
    %v1240 = vtanh.pop %v1233
    %v1241 = vmul.f32 %v1239, %v1179
    %1243 = vrot.lane.b32.xlu0 %v1240, 104
    %v1244 = vpop.permute.xlu0 %1243
    %v1246 = vmul.f32 %v1239, %v1244
    %1248 = vrot.lane.b32.xlu0 %v1246, 8
    %v1249 = vpop.permute.xlu0 %1248
    %v1251 = vadd.f32 %v1241, %v1249
    %v1252 = vtanh.pop %v1251
    %1254 = vrot.lane.b32.xlu0 %v1252, 8
    %v1255 = vpop.permute.xlu0 %1254
    %v1257 = vmul.f32 %v1239, %v1255
    %v1258 = vpack.c.bf16 %v1257, %v1257
    %1260 = vrot.lane.b32.xlu0 %v1258, 112
    %v1261 = vpop.permute.xlu0 %1260
    %v1263 = vsel %vm34, %v1261, 0
    %1265 = vmatprep.subr.bf16.mxu0 0
    %1266 = vmatpush1.bf16.msra.mxu0 0
    %1267 = vmatprep.subr.bf16.mxu0 0
    %1268 = vmatpush1.bf16.msra.mxu0 0
    %1269 = vmatprep.subr.bf16.mxu0 0
    %1270 = vmatpush1.bf16.msra.mxu0 0
    %1271 = vmatprep.subr.bf16.mxu0 0
    %1272 = vmatpush1.bf16.msra.mxu0 0
    %1273 = vmatprep.subr.bf16.mxu0 0
    %1274 = vmatpush1.bf16.msra.mxu0 0
    %1275 = vmatprep.subr.bf16.mxu0 0
    %1276 = vmatpush1.bf16.msra.mxu0 0
    %1277 = vmatprep.subr.bf16.mxu0 0
    %1278 = vmatpush1.bf16.msra.mxu0 0
    %1279 = vmatprep.subr.bf16.mxu0 0
    %1280 = vmatpush1.bf16.msra.mxu0 %v1119
    %1281 = vmatprep.subr.bf16.mxu0 0
    %1282 = vmatpush2.bf16.msra.mxu0 0
    %1283 = vmatprep.subr.bf16.mxu0 0
    %1284 = vmatpush2.bf16.msra.mxu0 0
    %1285 = vmatprep.subr.bf16.mxu0 0
    %1286 = vmatpush2.bf16.msra.mxu0 0
    %1287 = vmatprep.subr.bf16.mxu0 0
    %1288 = vmatpush2.bf16.msra.mxu0 0
    %1289 = vmatprep.subr.bf16.mxu0 0
    %1290 = vmatpush2.bf16.msra.mxu0 0
    %1291 = vmatprep.subr.bf16.mxu0 0
    %1292 = vmatpush2.bf16.msra.mxu0 0
    %1293 = vmatprep.subr.bf16.mxu0 0
    %1294 = vmatpush2.bf16.msra.mxu0 0
    %1295 = vmatprep.subr.bf16.mxu0 0
    %1296 = vmatpush2.bf16.msra.mxu0 0
    %1297 = vmatprep.mubr.bf16.mxu0 0
    %1298 = vmatmul.mubr.bf16.gmra.mxu0 %v1263
    %v1299 = vpop.f32.mrf.mxu0
    %v1300 = vadd.f32 0.0, %v1299
    %v1301 = vpop.f32.mrf.mxu0
    %v1302 = vpop.f32.mrf.mxu0
    %v1303 = vpop.f32.mrf.mxu0
    %1304 = vdwg.mxu0
    %v1305 = vadd.f32 %v1111, %v1300
    %v1306 = vxor.u32 %v1305, 2147483648
    %v1307 = vmul.f32 %v1306, 1.442695
    %v1308 = vpow.pop %v1307
    %v1309 = vadd.f32 %v1308, 1.0
    %v1310 = vrcp.pop %v1309
    %v1311 = vmul.f32 1.0, %v1310
    %v1312 = vtanh.pop %v1305
    %v1313 = vmul.f32 %v1311, %v1251
    %1315 = vrot.lane.b32.xlu0 %v1312, 104
    %v1316 = vpop.permute.xlu0 %1315
    %v1318 = vmul.f32 %v1311, %v1316
    %1320 = vrot.lane.b32.xlu0 %v1318, 8
    %v1321 = vpop.permute.xlu0 %1320
    %v1323 = vadd.f32 %v1313, %v1321
    %v1324 = vtanh.pop %v1323
    %1326 = vrot.lane.b32.xlu0 %v1324, 8
    %v1327 = vpop.permute.xlu0 %1326
    %v1329 = vmul.f32 %v1311, %v1327
    %v1330 = vpack.c.bf16 %v1329, %v1329
    %1332 = vrot.lane.b32.xlu0 %v1330, 112
    %v1333 = vpop.permute.xlu0 %1332
    %v1335 = vsel %vm34, %v1333, 0
    %1337 = vmatprep.subr.bf16.mxu0 0
    %1338 = vmatpush1.bf16.msra.mxu0 0
    %1339 = vmatprep.subr.bf16.mxu0 0
    %1340 = vmatpush1.bf16.msra.mxu0 0
    %1341 = vmatprep.subr.bf16.mxu0 0
    %1342 = vmatpush1.bf16.msra.mxu0 0
    %1343 = vmatprep.subr.bf16.mxu0 0
    %1344 = vmatpush1.bf16.msra.mxu0 0
    %1345 = vmatprep.subr.bf16.mxu0 0
    %1346 = vmatpush1.bf16.msra.mxu0 0
    %1347 = vmatprep.subr.bf16.mxu0 0
    %1348 = vmatpush1.bf16.msra.mxu0 0
    %1349 = vmatprep.subr.bf16.mxu0 0
    %1350 = vmatpush1.bf16.msra.mxu0 0
    %1351 = vmatprep.subr.bf16.mxu0 0
    %1352 = vmatpush1.bf16.msra.mxu0 %v1119
    %1353 = vmatprep.subr.bf16.mxu0 0
    %1354 = vmatpush2.bf16.msra.mxu0 0
    %1355 = vmatprep.subr.bf16.mxu0 0
    %1356 = vmatpush2.bf16.msra.mxu0 0
    %1357 = vmatprep.subr.bf16.mxu0 0
    %1358 = vmatpush2.bf16.msra.mxu0 0
    %1359 = vmatprep.subr.bf16.mxu0 0
    %1360 = vmatpush2.bf16.msra.mxu0 0
    %1361 = vmatprep.subr.bf16.mxu0 0
    %1362 = vmatpush2.bf16.msra.mxu0 0
    %1363 = vmatprep.subr.bf16.mxu0 0
    %1364 = vmatpush2.bf16.msra.mxu0 0
    %1365 = vmatprep.subr.bf16.mxu0 0
    %1366 = vmatpush2.bf16.msra.mxu0 0
    %1367 = vmatprep.subr.bf16.mxu0 0
    %1368 = vmatpush2.bf16.msra.mxu0 0
    %1369 = vmatprep.mubr.bf16.mxu0 0
    %1370 = vmatmul.mubr.bf16.gmra.mxu0 %v1335
    %v1371 = vpop.f32.mrf.mxu0
    %v1372 = vadd.f32 0.0, %v1371
    %v1373 = vpop.f32.mrf.mxu0
    %v1374 = vpop.f32.mrf.mxu0
    %v1375 = vpop.f32.mrf.mxu0
    %1376 = vdwg.mxu0
    %v1377 = vadd.f32 %v1111, %v1372
    %v1378 = vxor.u32 %v1377, 2147483648
    %v1379 = vmul.f32 %v1378, 1.442695
    %v1380 = vpow.pop %v1379
    %v1381 = vadd.f32 %v1380, 1.0
    %v1382 = vrcp.pop %v1381
    %v1383 = vmul.f32 1.0, %v1382
    %v1384 = vtanh.pop %v1377
    %v1385 = vmul.f32 %v1383, %v1323
    %1387 = vrot.lane.b32.xlu0 %v1384, 104
    %v1388 = vpop.permute.xlu0 %1387
    %v1390 = vmul.f32 %v1383, %v1388
    %1392 = vrot.lane.b32.xlu0 %v1390, 8
    %v1393 = vpop.permute.xlu0 %1392
    %v1395 = vadd.f32 %v1385, %v1393
    %v1396 = vtanh.pop %v1395
    %1398 = vrot.lane.b32.xlu0 %v1396, 8
    %v1399 = vpop.permute.xlu0 %1398
    %v1401 = vmul.f32 %v1383, %v1399
    %v1402 = vpack.c.bf16 %v1401, %v1401
    %1404 = vrot.lane.b32.xlu0 %v1402, 112
    %v1405 = vpop.permute.xlu0 %1404
    %v1407 = vsel %vm34, %v1405, 0
    %1409 = vmatprep.subr.bf16.mxu0 0
    %1410 = vmatpush1.bf16.msra.mxu0 0
    %1411 = vmatprep.subr.bf16.mxu0 0
    %1412 = vmatpush1.bf16.msra.mxu0 0
    %1413 = vmatprep.subr.bf16.mxu0 0
    %1414 = vmatpush1.bf16.msra.mxu0 0
    %1415 = vmatprep.subr.bf16.mxu0 0
    %1416 = vmatpush1.bf16.msra.mxu0 0
    %1417 = vmatprep.subr.bf16.mxu0 0
    %1418 = vmatpush1.bf16.msra.mxu0 0
    %1419 = vmatprep.subr.bf16.mxu0 0
    %1420 = vmatpush1.bf16.msra.mxu0 0
    %1421 = vmatprep.subr.bf16.mxu0 0
    %1422 = vmatpush1.bf16.msra.mxu0 0
    %1423 = vmatprep.subr.bf16.mxu0 0
    %1424 = vmatpush1.bf16.msra.mxu0 %v1119
    %1425 = vmatprep.subr.bf16.mxu0 0
    %1426 = vmatpush2.bf16.msra.mxu0 0
    %1427 = vmatprep.subr.bf16.mxu0 0
    %1428 = vmatpush2.bf16.msra.mxu0 0
    %1429 = vmatprep.subr.bf16.mxu0 0
    %1430 = vmatpush2.bf16.msra.mxu0 0
    %1431 = vmatprep.subr.bf16.mxu0 0
    %1432 = vmatpush2.bf16.msra.mxu0 0
    %1433 = vmatprep.subr.bf16.mxu0 0
    %1434 = vmatpush2.bf16.msra.mxu0 0
    %1435 = vmatprep.subr.bf16.mxu0 0
    %1436 = vmatpush2.bf16.msra.mxu0 0
    %1437 = vmatprep.subr.bf16.mxu0 0
    %1438 = vmatpush2.bf16.msra.mxu0 0
    %1439 = vmatprep.subr.bf16.mxu0 0
    %1440 = vmatpush2.bf16.msra.mxu0 0
    %1441 = vmatprep.mubr.bf16.mxu0 0
    %1442 = vmatmul.mubr.bf16.gmra.mxu0 %v1407
    %v1443 = vpop.f32.mrf.mxu0
    %v1444 = vadd.f32 0.0, %v1443
    %v1445 = vpop.f32.mrf.mxu0
    %v1446 = vpop.f32.mrf.mxu0
    %v1447 = vpop.f32.mrf.mxu0
    %1448 = vdwg.mxu0
    %v1449 = vadd.f32 %v1111, %v1444
    %v1450 = vxor.u32 %v1449, 2147483648
    %v1451 = vmul.f32 %v1450, 1.442695
    %v1452 = vpow.pop %v1451
    %v1453 = vadd.f32 %v1452, 1.0
    %v1454 = vrcp.pop %v1453
    %v1455 = vmul.f32 1.0, %v1454
    %v1456 = vtanh.pop %v1449
    %v1457 = vmul.f32 %v1455, %v1395
    %1459 = vrot.lane.b32.xlu0 %v1456, 104
    %v1460 = vpop.permute.xlu0 %1459
    %v1462 = vmul.f32 %v1455, %v1460
    %1464 = vrot.lane.b32.xlu0 %v1462, 8
    %v1465 = vpop.permute.xlu0 %1464
    %v1467 = vadd.f32 %v1457, %v1465
    %v1468 = vtanh.pop %v1467
    %1470 = vrot.lane.b32.xlu0 %v1468, 8
    %v1471 = vpop.permute.xlu0 %1470
    %v1473 = vmul.f32 %v1455, %v1471
    %v1474 = vpack.c.bf16 %v1473, %v1473
    %1476 = vrot.lane.b32.xlu0 %v1474, 112
    %v1477 = vpop.permute.xlu0 %1476
    %v1479 = vsel %vm34, %v1477, 0
    %1481 = vmatprep.subr.bf16.mxu0 0
    %1482 = vmatpush1.bf16.msra.mxu0 0
    %1483 = vmatprep.subr.bf16.mxu0 0
    %1484 = vmatpush1.bf16.msra.mxu0 0
    %1485 = vmatprep.subr.bf16.mxu0 0
    %1486 = vmatpush1.bf16.msra.mxu0 0
    %1487 = vmatprep.subr.bf16.mxu0 0
    %1488 = vmatpush1.bf16.msra.mxu0 0
    %1489 = vmatprep.subr.bf16.mxu0 0
    %1490 = vmatpush1.bf16.msra.mxu0 0
    %1491 = vmatprep.subr.bf16.mxu0 0
    %1492 = vmatpush1.bf16.msra.mxu0 0
    %1493 = vmatprep.subr.bf16.mxu0 0
    %1494 = vmatpush1.bf16.msra.mxu0 0
    %1495 = vmatprep.subr.bf16.mxu0 0
    %1496 = vmatpush1.bf16.msra.mxu0 %v1119
    %1497 = vmatprep.subr.bf16.mxu0 0
    %1498 = vmatpush2.bf16.msra.mxu0 0
    %1499 = vmatprep.subr.bf16.mxu0 0
    %1500 = vmatpush2.bf16.msra.mxu0 0
    %1501 = vmatprep.subr.bf16.mxu0 0
    %1502 = vmatpush2.bf16.msra.mxu0 0
    %1503 = vmatprep.subr.bf16.mxu0 0
    %1504 = vmatpush2.bf16.msra.mxu0 0
    %1505 = vmatprep.subr.bf16.mxu0 0
    %1506 = vmatpush2.bf16.msra.mxu0 0
    %1507 = vmatprep.subr.bf16.mxu0 0
    %1508 = vmatpush2.bf16.msra.mxu0 0
    %1509 = vmatprep.subr.bf16.mxu0 0
    %1510 = vmatpush2.bf16.msra.mxu0 0
    %1511 = vmatprep.subr.bf16.mxu0 0
    %1512 = vmatpush2.bf16.msra.mxu0 0
    %1513 = vmatprep.mubr.bf16.mxu0 0
    %1514 = vmatmul.mubr.bf16.gmra.mxu0 %v1479
    %v1515 = vpop.f32.mrf.mxu0
    %v1516 = vadd.f32 0.0, %v1515
    %v1517 = vpop.f32.mrf.mxu0
    %v1518 = vpop.f32.mrf.mxu0
    %v1519 = vpop.f32.mrf.mxu0
    %1520 = vdwg.mxu0
    %v1521 = vadd.f32 %v1111, %v1516
    %v1522 = vxor.u32 %v1521, 2147483648
    %v1523 = vmul.f32 %v1522, 1.442695
    %v1524 = vpow.pop %v1523
    %v1525 = vadd.f32 %v1524, 1.0
    %v1526 = vrcp.pop %v1525
    %v1527 = vmul.f32 1.0, %v1526
    %v1528 = vtanh.pop %v1521
    %v1529 = vmul.f32 %v1527, %v1467
    %1531 = vrot.lane.b32.xlu0 %v1528, 104
    %v1532 = vpop.permute.xlu0 %1531
    %v1534 = vmul.f32 %v1527, %v1532
    %1536 = vrot.lane.b32.xlu0 %v1534, 8
    %v1537 = vpop.permute.xlu0 %1536
    %v1539 = vadd.f32 %v1529, %v1537
    %v1540 = vtanh.pop %v1539
    %1542 = vrot.lane.b32.xlu0 %v1540, 8
    %v1543 = vpop.permute.xlu0 %1542
    %v1545 = vmul.f32 %v1527, %v1543
    %v1546 = vpack.c.bf16 %v1545, %v1545
    %1548 = vrot.lane.b32.xlu0 %v1546, 112
    %v1549 = vpop.permute.xlu0 %1548
    %v1551 = vsel %vm34, %v1549, 0
    %1553 = vmatprep.subr.bf16.mxu0 0
    %1554 = vmatpush1.bf16.msra.mxu0 0
    %1555 = vmatprep.subr.bf16.mxu0 0
    %1556 = vmatpush1.bf16.msra.mxu0 0
    %1557 = vmatprep.subr.bf16.mxu0 0
    %1558 = vmatpush1.bf16.msra.mxu0 0
    %1559 = vmatprep.subr.bf16.mxu0 0
    %1560 = vmatpush1.bf16.msra.mxu0 0
    %1561 = vmatprep.subr.bf16.mxu0 0
    %1562 = vmatpush1.bf16.msra.mxu0 0
    %1563 = vmatprep.subr.bf16.mxu0 0
    %1564 = vmatpush1.bf16.msra.mxu0 0
    %1565 = vmatprep.subr.bf16.mxu0 0
    %1566 = vmatpush1.bf16.msra.mxu0 0
    %1567 = vmatprep.subr.bf16.mxu0 0
    %1568 = vmatpush1.bf16.msra.mxu0 %v1119
    %1569 = vmatprep.subr.bf16.mxu0 0
    %1570 = vmatpush2.bf16.msra.mxu0 0
    %1571 = vmatprep.subr.bf16.mxu0 0
    %1572 = vmatpush2.bf16.msra.mxu0 0
    %1573 = vmatprep.subr.bf16.mxu0 0
    %1574 = vmatpush2.bf16.msra.mxu0 0
    %1575 = vmatprep.subr.bf16.mxu0 0
    %1576 = vmatpush2.bf16.msra.mxu0 0
    %1577 = vmatprep.subr.bf16.mxu0 0
    %1578 = vmatpush2.bf16.msra.mxu0 0
    %1579 = vmatprep.subr.bf16.mxu0 0
    %1580 = vmatpush2.bf16.msra.mxu0 0
    %1581 = vmatprep.subr.bf16.mxu0 0
    %1582 = vmatpush2.bf16.msra.mxu0 0
    %1583 = vmatprep.subr.bf16.mxu0 0
    %1584 = vmatpush2.bf16.msra.mxu0 0
    %1585 = vmatprep.mubr.bf16.mxu0 0
    %1586 = vmatmul.mubr.bf16.gmra.mxu0 %v1551
    %v1587 = vpop.f32.mrf.mxu0
    %v1588 = vadd.f32 0.0, %v1587
    %v1589 = vpop.f32.mrf.mxu0
    %v1590 = vpop.f32.mrf.mxu0
    %v1591 = vpop.f32.mrf.mxu0
    %1592 = vdwg.mxu0
    %v1593 = vadd.f32 %v1111, %v1588
    %v1594 = vxor.u32 %v1593, 2147483648
    %v1595 = vmul.f32 %v1594, 1.442695
    %v1596 = vpow.pop %v1595
    %v1597 = vadd.f32 %v1596, 1.0
    %v1598 = vrcp.pop %v1597
    %v1599 = vmul.f32 1.0, %v1598
    %v1600 = vtanh.pop %v1593
    %v1601 = vmul.f32 %v1599, %v1539
    %1603 = vrot.lane.b32.xlu0 %v1600, 104
    %v1604 = vpop.permute.xlu0 %1603
    %v1606 = vmul.f32 %v1599, %v1604
    %1608 = vrot.lane.b32.xlu0 %v1606, 8
    %v1609 = vpop.permute.xlu0 %1608
    %v1611 = vadd.f32 %v1601, %v1609
    %v1612 = vtanh.pop %v1611
    %1614 = vrot.lane.b32.xlu0 %v1612, 8
    %v1615 = vpop.permute.xlu0 %1614
    %v1617 = vmul.f32 %v1599, %v1615
    %v1618 = vpack.c.bf16 %v1617, %v1617
    %1620 = vrot.lane.b32.xlu0 %v1618, 112
    %v1621 = vpop.permute.xlu0 %1620
    %v1623 = vsel %vm34, %v1621, 0
    %1625 = vmatprep.subr.bf16.mxu0 0
    %1626 = vmatpush1.bf16.msra.mxu0 0
    %1627 = vmatprep.subr.bf16.mxu0 0
    %1628 = vmatpush1.bf16.msra.mxu0 0
    %1629 = vmatprep.subr.bf16.mxu0 0
    %1630 = vmatpush1.bf16.msra.mxu0 0
    %1631 = vmatprep.subr.bf16.mxu0 0
    %1632 = vmatpush1.bf16.msra.mxu0 0
    %1633 = vmatprep.subr.bf16.mxu0 0
    %1634 = vmatpush1.bf16.msra.mxu0 0
    %1635 = vmatprep.subr.bf16.mxu0 0
    %1636 = vmatpush1.bf16.msra.mxu0 0
    %1637 = vmatprep.subr.bf16.mxu0 0
    %1638 = vmatpush1.bf16.msra.mxu0 0
    %1639 = vmatprep.subr.bf16.mxu0 0
    %1640 = vmatpush1.bf16.msra.mxu0 %v1119
    %1641 = vmatprep.subr.bf16.mxu0 0
    %1642 = vmatpush2.bf16.msra.mxu0 0
    %1643 = vmatprep.subr.bf16.mxu0 0
    %1644 = vmatpush2.bf16.msra.mxu0 0
    %1645 = vmatprep.subr.bf16.mxu0 0
    %1646 = vmatpush2.bf16.msra.mxu0 0
    %1647 = vmatprep.subr.bf16.mxu0 0
    %1648 = vmatpush2.bf16.msra.mxu0 0
    %1649 = vmatprep.subr.bf16.mxu0 0
    %1650 = vmatpush2.bf16.msra.mxu0 0
    %1651 = vmatprep.subr.bf16.mxu0 0
    %1652 = vmatpush2.bf16.msra.mxu0 0
    %1653 = vmatprep.subr.bf16.mxu0 0
    %1654 = vmatpush2.bf16.msra.mxu0 0
    %1655 = vmatprep.subr.bf16.mxu0 0
    %1656 = vmatpush2.bf16.msra.mxu0 0
    %1657 = vmatprep.mubr.bf16.mxu0 0
    %1658 = vmatmul.mubr.bf16.gmra.mxu0 %v1623
    %v1659 = vpop.f32.mrf.mxu0
    %v1660 = vadd.f32 0.0, %v1659
    %v1661 = vpop.f32.mrf.mxu0
    %v1662 = vpop.f32.mrf.mxu0
    %v1663 = vpop.f32.mrf.mxu0
    %1664 = vdwg.mxu0
    %v1665 = vadd.f32 %v1111, %v1660
    %v1666 = vxor.u32 %v1665, 2147483648
    %v1667 = vmul.f32 %v1666, 1.442695
    %v1668 = vpow.pop %v1667
    %v1669 = vadd.f32 %v1668, 1.0
    %v1670 = vrcp.pop %v1669
    %v1671 = vmul.f32 1.0, %v1670
    %v1672 = vtanh.pop %v1665
    %v1673 = vmul.f32 %v1671, %v1611
    %1675 = vrot.lane.b32.xlu0 %v1672, 104
    %v1676 = vpop.permute.xlu0 %1675
    %v1678 = vmul.f32 %v1671, %v1676
    %1680 = vrot.lane.b32.xlu0 %v1678, 8
    %v1681 = vpop.permute.xlu0 %1680
    %v1683 = vadd.f32 %v1673, %v1681
    %v1684 = vtanh.pop %v1683
    %1686 = vrot.lane.b32.xlu0 %v1684, 8
    %v1687 = vpop.permute.xlu0 %1686
    %v1689 = vmul.f32 %v1671, %v1687
    %1691 = vrot.lane.b32.xlu0 %v1185, 112
    %v1692 = vpop.permute.xlu0 %1691
    %1695 = vrot.lane.b32.xlu0 %v1257, 120
    %v1696 = vpop.permute.xlu0 %1695
    %1699 = vrot.lane.b32.xlu0 %v1401, 8
    %v1700 = vpop.permute.xlu0 %1699
    %1703 = vrot.lane.b32.xlu0 %v1473, 16
    %v1704 = vpop.permute.xlu0 %1703
    %1707 = vrot.lane.b32.xlu0 %v1545, 24
    %v1708 = vpop.permute.xlu0 %1707
    %1711 = vrot.lane.b32.xlu0 %v1617, 32
    %v1712 = vpop.permute.xlu0 %1711
    %1715 = vrot.lane.b32.xlu0 %v1689, 40
    %v1716 = vpop.permute.xlu0 %1715
    %v1718 = vsel %vm34, %v1692, %v1696
    %v1719 = vsel %vm89, %v1718, %v1329
    %vm1720 = vcmask 195584
    %v1721 = vsel %vm1720, %v1719, %v1700
    %vm1722 = vcmask 261120
    %v1723 = vsel %vm1722, %v1721, %v1704
    %vm1724 = vcmask 326656
    %v1725 = vsel %vm1724, %v1723, %v1708
    %vm1726 = vcmask 392192
    %v1727 = vsel %vm1726, %v1725, %v1712
    %vm1728 = vcmask 457728
    %v1729 = vsel %vm1728, %v1727, %v1716
    %vm1730 = vcmask 517120
    %1731 = vst.msk [vmem:[#allocation2] sm:$0x3] %vm1730, %v1729
    // Predicated region
    $region10: #{tpu_custom_call.1} parent=1 // pred_check
      _
    $region11: #{tpu_custom_call.1} parent=1 // pred_check_branch
      %1733 = sbr.rel (0) target = $region13
    $region12: #{tpu_custom_call.1} parent=1 // pred_region
      %s1735 = ssub.s32 32, 32
      %1736 = vsyncadd [#allocation3], %s1735
      %s1738 = sshll.u32 [#allocation2], 4
      %s1739 = int_to_ptr.vmem [resolvable:$true] %s1738
      %1741 = dma.vmem_to_hbm [thread:$0]  %s1739, 32, %s2, [#allocation3]
    $region13: #{tpu_custom_call.1} parent=1 // pred_fallthru
      _
    // Predicated region
    $region14: #{tpu_custom_call.1} parent=1 // pred_check
      _
    $region15: #{tpu_custom_call.1} parent=1 // pred_check_branch
      %1743 = sbr.rel (0) target = $region17
    $region16: #{tpu_custom_call.1} parent=1 // pred_region
      %1744 = dma.done [#allocation3], 32
    $region17: #{tpu_custom_call.1} parent=1 // pred_fallthru
      _
    %1745 = vsyncpa [#allocation3], 1

</llo_original>
